<compile_context>
chip_gen: v5e
topology: v5e:2x2
jax: 0.10.0
libtpu: 0.0.40
codegen_flags: <defaults>
</compile_context>

<pallas_src>
import functools

import numpy as np
import jax
import jax.numpy as jnp
from jax import lax
from jax.experimental import pallas as pl
from jax.experimental.pallas import tpu as pltpu

LEAKY_SLOPE = 0.01   # nn.LeakyReLU default negative_slope
BN_EPS = 1e-5        # nn.BatchNorm2d default eps


# ---------------- glue: deterministic pooling / upsampling coefficients ----------------

def _adaptive_bins(in_size, out_size):
    # PyTorch AdaptiveAvgPool2d bin boundaries: [floor(i*I/O), ceil((i+1)*I/O))
    return [(int(np.floor(i * in_size / out_size)),
             int(np.ceil((i + 1) * in_size / out_size))) for i in range(out_size)]


def _pool_matrix(in_size, out_size):
    m = np.zeros((out_size, in_size), np.float32)
    for i, (a, b) in enumerate(_adaptive_bins(in_size, out_size)):
        m[i, a:b] = 1.0 / (b - a)
    return m


def _upsample_matrix(out_size, in_size):
    # bilinear, align_corners=True, per-axis interpolation weights
    m = np.zeros((out_size, in_size), np.float32)
    if in_size == 1:
        m[:, 0] = 1.0
        return m
    scale = (in_size - 1) / (out_size - 1) if out_size > 1 else 0.0
    for o in range(out_size):
        src = o * scale
        i0 = min(int(np.floor(src)), in_size - 1)
        i1 = min(i0 + 1, in_size - 1)
        f = src - i0
        m[o, i0] += 1.0 - f
        m[o, i1] += f
    return m


# ---------------- Pallas kernels ----------------

def _stages_kernel(x_ref, *refs, co):
    """All pyramid stages fused: x is read from HBM once per image; pooling, 1x1 conv and
    bilinear upsample are each a single MXU matmul (no per-bin VPU loops).

    x_ref : (1, C, HW) bf16
    per stage k: pT (HW, s2p) bf16, uT (s2p, HW) bf16, w1 (CO, C) bf16 [BN scale folded],
                 shift (CO, 1) f32
    o_ref (last ref): (1, ns*CO, HW) bf16 — stage k occupies channel rows [k*CO, (k+1)*CO)
    """
    o_ref = refs[-1]
    srefs = refs[:-1]
    ns = len(srefs) // 4
    xv = x_ref[0]                                                          # (C, HW) bf16
    for k in range(ns):
        pT_ref, uT_ref, w1_ref, sh_ref = srefs[4 * k:4 * k + 4]
        # adaptive average pool over both axes at once: (C, HW) @ (HW, s^2)       [MXU]
        pooled = jnp.dot(xv, pT_ref[...], preferred_element_type=jnp.float32)
        # 1x1 conv (no bias, BN scale pre-folded) + BN shift + LeakyReLU          [MXU]
        y = jnp.dot(w1_ref[...], pooled.astype(jnp.bfloat16),
                    preferred_element_type=jnp.float32) + sh_ref[...]
        y = jnp.where(y > 0, y, LEAKY_SLOPE * y)
        # bilinear upsample (align_corners=True): (CO, s^2) @ (s^2, HW)           [MXU]
        up = jnp.dot(y.astype(jnp.bfloat16), uT_ref[...],
                     preferred_element_type=jnp.float32)
        o_ref[0, k * co:(k + 1) * co, :] = up.astype(o_ref.dtype)


def _shift_hw(v, off):
    """u[:, j] = v[:, j + off] where j + off lies in [0, HW); zero-filled otherwise."""
    if off == 0:
        return v
    hw = v.shape[1]
    pad = jnp.zeros((v.shape[0], abs(off)), v.dtype)
    if off > 0:
        return jnp.concatenate([v[:, off:], pad], axis=1)
    return jnp.concatenate([pad, v[:, :hw + off]], axis=1)


def _bottleneck_kernel(pri_ref, x_ref, wp_ref, wx_ref, shift_ref, em_ref,
                       o_ref, acc_ref, *, width):
    """Conv2d 3x3 pad=1 (no bias) over cat([priors, x], channels) + BN shift + LeakyReLU.

    pri_ref : (1, Cp, HW) bf16        x_ref : (1, C, HW) bf16
    wp_ref  : (3, 3, COt, Cp) bf16    wx_ref: (3, 3, COt, C) bf16   (BN scale folded)
    shift_ref: (COt, 1) f32           em_ref: (2, HW) bf16 0/1 column-edge masks
    o_ref   : (1, COt, HW) f32 (lane-dense; == NCHW after a free reshape)
    acc_ref : (COt, HW) f32 VMEM accumulator; the first tap writes it, later taps RMW it,
              so there is no multi-MiB traced accumulator and no full-scratch zeroing.
    """
    pri = pri_ref[0]                        # (Cp, HW) bf16
    xv = x_ref[0]                           # (C,  HW) bf16
    em_l = em_ref[0:1, :]                   # zero where x == 0      (kx == 0 taps)
    em_r = em_ref[1:2, :]                   # zero where x == W - 1  (kx == 2 taps)

    def tap(v, dy, dx):
        # column j holds v at spatial position (y + dy - 1, x + dx - 1); zero outside.
        u = _shift_hw(v, (dy - 1) * width + (dx - 1))
        if dx == 0:
            u = u * em_l
        elif dx == 2:
            u = u * em_r
        return u

    first = True
    for dy in range(3):
        for dx in range(3):
            for w_ref, v in ((wp_ref, pri), (wx_ref, xv)):
                contrib = lax.dot_general(
                    w_ref[dy, dx], tap(v, dy, dx),
                    dimension_numbers=(((1,), (0,)), ((), ())),
                    preferred_element_type=jnp.float32)                   # (COt, HW)
                if first:
                    acc_ref[...] = contrib
                    first = False
                else:
                    acc_ref[...] += contrib

    y = acc_ref[...] + shift_ref[...]              # BN shift (scale folded into weights)
    o_ref[0] = jnp.where(y > 0, y, LEAKY_SLOPE * y).astype(o_ref.dtype)


# ---------------- pallas_call wrappers ----------------

def _run_stages(x_flat, stage_ops, co):
    n, c, hw = x_flat.shape
    ns = len(stage_ops) // 4
    # Grid-invariant operands: single-buffered (double-buffering them only doubles VMEM).
    const_spec = lambda shp: pl.BlockSpec(shp, lambda i: (0, 0),
                                          pipeline_mode=pl.Buffered(1))
    in_specs = [pl.BlockSpec((1, c, hw), lambda i: (i, 0, 0))]
    in_specs += [const_spec(op.shape) for op in stage_ops]
    return pl.pallas_call(
        functools.partial(_stages_kernel, co=co),
        out_shape=jax.ShapeDtypeStruct((n, ns * co, hw), jnp.bfloat16),
        grid=(n,),
        in_specs=in_specs,
        out_specs=pl.BlockSpec((1, ns * co, hw), lambda i: (i, 0, 0)),
        compiler_params=pltpu.CompilerParams(
            dimension_semantics=("parallel",),
            vmem_limit_bytes=64 << 20),
    )(x_flat, *stage_ops)


def _run_bottleneck(priors, x_flat, wp, wx, shift_col, edge_masks, *, width, co_tile):
    n, cp, hw = priors.shape
    c = x_flat.shape[1]
    co = wp.shape[2]
    co_t = min(co_tile, co)
    if co % co_t:
        co_t = co
    grid = (n, co // co_t)
    return pl.pallas_call(
        functools.partial(_bottleneck_kernel, width=width),
        out_shape=jax.ShapeDtypeStruct((n, co, hw), jnp.float32),
        grid=grid,
        in_specs=[
            pl.BlockSpec((1, cp, hw), lambda i, j: (i, 0, 0)),
            pl.BlockSpec((1, c, hw), lambda i, j: (i, 0, 0)),
            pl.BlockSpec((3, 3, co_t, cp), lambda i, j: (0, 0, j, 0)),
            pl.BlockSpec((3, 3, co_t, c), lambda i, j: (0, 0, j, 0)),
            pl.BlockSpec((co_t, 1), lambda i, j: (j, 0)),
            pl.BlockSpec((2, hw), lambda i, j: (0, 0), pipeline_mode=pl.Buffered(1)),
        ],
        out_specs=pl.BlockSpec((1, co_t, hw), lambda i, j: (i, j, 0)),
        scratch_shapes=[pltpu.VMEM((co_t, hw), jnp.float32)],
        compiler_params=pltpu.CompilerParams(
            dimension_semantics=("parallel", "parallel"),
            vmem_limit_bytes=64 << 20),
    )(priors, x_flat, wp, wx, shift_col, edge_masks)


# ---------------- parameters (deterministic, synthetic) ----------------

def init_params(key, features, out_features, sizes):
    params = {"stages": [], "sizes": tuple(sizes)}
    for _ in sizes:
        key, k1, k2, k3, k4, k5 = jax.random.split(key, 6)
        params["stages"].append(dict(
            w=0.1 * jax.random.normal(k1, (out_features, features, 1, 1), jnp.float32),
            gamma=jax.random.uniform(k2, (out_features,), jnp.float32, 0.5, 1.5),
            beta=0.1 * jax.random.normal(k3, (out_features,), jnp.float32),
            mean=0.1 * jax.random.normal(k4, (out_features,), jnp.float32),
            var=jax.random.uniform(k5, (out_features,), jnp.float32, 0.5, 1.5),
        ))
    cin = features + len(sizes) * out_features
    key, k1, k2, k3, k4, k5 = jax.random.split(key, 6)
    params["bottleneck"] = dict(
        w=0.05 * jax.random.normal(k1, (out_features, cin, 3, 3), jnp.float32),
        gamma=jax.random.uniform(k2, (out_features,), jnp.float32, 0.5, 1.5),
        beta=0.1 * jax.random.normal(k3, (out_features,), jnp.float32),
        mean=0.1 * jax.random.normal(k4, (out_features,), jnp.float32),
        var=jax.random.uniform(k5, (out_features,), jnp.float32, 0.5, 1.5),
    )
    return params


def _bn_affine(p):
    scale = p["gamma"] / jnp.sqrt(p["var"] + BN_EPS)
    shift = p["beta"] - p["mean"] * scale
    return scale, shift


# ---------------- forward (wrapper, NCHW in / NCHW out) ----------------

def psp_forward(feats_nchw, params, *, co_tile=256):
    n, c, h, w = feats_nchw.shape
    hw = h * w
    sizes = params["sizes"]
    ns = len(sizes)
    co = params["stages"][0]["w"].shape[0]

    # NCHW -> (N, C, H*W) is a free reshape (no transpose); bf16 halves downstream HBM traffic.
    x_flat = feats_nchw.reshape(n, c, hw).astype(jnp.bfloat16)

    stage_ops = []
    for size, sp in zip(sizes, params["stages"]):
        s2 = size * size
        s2p = max(8, s2)   # pad the tiny pyramid axis so no MXU operand has a size-1 dim
        p2d = np.kron(_pool_matrix(h, size), _pool_matrix(w, size))           # (s^2, HW)
        u2d = np.kron(_upsample_matrix(h, size), _upsample_matrix(w, size))   # (HW, s^2)
        pT = np.zeros((hw, s2p), np.float32)
        pT[:, :s2] = p2d.T
        uT = np.zeros((s2p, hw), np.float32)
        uT[:s2, :] = u2d.T
        scale, shift = _bn_affine(sp)
        w1 = sp["w"][:, :, 0, 0] * scale[:, None]                             # (CO, C), BN scale folded
        stage_ops += [jnp.asarray(pT, jnp.bfloat16),
                      jnp.asarray(uT, jnp.bfloat16),
                      w1.astype(jnp.bfloat16),
                      shift[:, None]]                                         # (CO, 1) f32

    # All pyramid stages fused: x DMA'd once per image, priors written once (bf16).
    priors = _run_stages(x_flat, stage_ops, co)                               # (N, ns*CO, HW)

    bp = params["bottleneck"]
    scale_b, shift_b = _bn_affine(bp)
    wks = bp["w"] * scale_b[:, None, None, None]                              # (CO, Cin, 3, 3), scale folded
    cp = ns * co
    wp = jnp.transpose(wks[:, :cp], (2, 3, 0, 1)).astype(jnp.bfloat16)        # (3, 3, CO, Cp)
    wx = jnp.transpose(wks[:, cp:], (2, 3, 0, 1)).astype(jnp.bfloat16)        # (3, 3, CO, C)

    colw = np.arange(hw) % w
    edge_masks = jnp.asarray(
        np.stack([(colw != 0), (colw != w - 1)]).astype(np.float32), jnp.bfloat16)  # (2, HW)

    out = _run_bottleneck(priors, x_flat, wp, wx, shift_b[:, None], edge_masks,
                          width=w, co_tile=co_tile)                           # (N, CO, HW) f32
    return out.reshape(n, co, h, w)                                           # free reshape -> NCHW


# ---------------- pure-JAX reference (for verification) ----------------

def psp_reference(feats_nchw, params):
    n, c, h, w = feats_nchw.shape
    x = feats_nchw.astype(jnp.float32)
    priors = []
    for size, sp in zip(params["sizes"], params["stages"]):
        rows = []
        for (a, b) in _adaptive_bins(h, size):
            cols = [jnp.mean(x[:, :, a:b, c0:c1], axis=(2, 3))
                    for (c0, c1) in _adaptive_bins(w, size)]
            rows.append(jnp.stack(cols, axis=-1))
        pooled = jnp.stack(rows, axis=-2)                                     # (N, C, s, s)
        y = jnp.einsum('ncij,oc->noij', pooled, sp["w"][:, :, 0, 0],
                       precision=jax.lax.Precision.HIGHEST)
        scale = sp["gamma"] / jnp.sqrt(sp["var"] + BN_EPS)
        shift = sp["beta"] - sp["mean"] * scale
        y = y * scale[None, :, None, None] + shift[None, :, None, None]
        y = jnp.where(y > 0, y, LEAKY_SLOPE * y)
        uh = jnp.asarray(_upsample_matrix(h, size))
        uw = jnp.asarray(_upsample_matrix(w, size))
        y = jnp.einsum('hi,wj,noij->nohw', uh, uw, y, precision=jax.lax.Precision.HIGHEST)
        priors.append(y)
    cat = jnp.concatenate(priors + [x], axis=1)
    bp = params["bottleneck"]
    out = jax.lax.conv_general_dilated(cat, bp["w"], (1, 1), ((1, 1), (1, 1)),
                                       dimension_numbers=('NCHW', 'OIHW', 'NCHW'),
                                       precision=jax.lax.Precision.HIGHEST)
    scale = bp["gamma"] / jnp.sqrt(bp["var"] + BN_EPS)
    shift = bp["beta"] - bp["mean"] * scale
    out = out * scale[None, :, None, None] + shift[None, :, None, None]
    return jnp.where(out > 0, out, LEAKY_SLOPE * out)


if __name__ == "__main__":
    N, FEATURES, OUT_FEATURES = 2, 8, 16
    H = W = 16
    SIZES = (1, 2, 3, 6)

    key = jax.random.PRNGKey(0)
    kx, kp = jax.random.split(key)
    feats = jax.random.normal(kx, (N, FEATURES, H, W), jnp.float32)   # NCHW like PyTorch
    params = init_params(kp, FEATURES, OUT_FEATURES, SIZES)

    # co_tile=8 -> two CO tiles, exercising the tiled (N, CO) grid at the toy size.
    out = jax.block_until_ready(psp_forward(feats, params, co_tile=8))
    assert out.shape == (N, OUT_FEATURES, H, W)

    ref = jax.block_until_ready(psp_reference(feats, params))
    np.testing.assert_allclose(np.asarray(out), np.asarray(ref), rtol=1.5e-2, atol=3e-2)

    print("KERNEL_OK")
</pallas_src>

<mosaic_0001>
module attributes {stable_mosaic.version = 11 : i64} {
  func.func @_stages_kernel(%arg0: i32, %arg1: memref<1x8x256xbf16, #tpu.memory_space<vmem>>, %arg2: memref<256x8xbf16, #tpu.memory_space<vmem>>, %arg3: memref<8x256xbf16, #tpu.memory_space<vmem>>, %arg4: memref<16x8xbf16, #tpu.memory_space<vmem>>, %arg5: memref<16x1xf32, #tpu.memory_space<vmem>>, %arg6: memref<256x8xbf16, #tpu.memory_space<vmem>>, %arg7: memref<8x256xbf16, #tpu.memory_space<vmem>>, %arg8: memref<16x8xbf16, #tpu.memory_space<vmem>>, %arg9: memref<16x1xf32, #tpu.memory_space<vmem>>, %arg10: memref<256x9xbf16, #tpu.memory_space<vmem>>, %arg11: memref<9x256xbf16, #tpu.memory_space<vmem>>, %arg12: memref<16x8xbf16, #tpu.memory_space<vmem>>, %arg13: memref<16x1xf32, #tpu.memory_space<vmem>>, %arg14: memref<256x36xbf16, #tpu.memory_space<vmem>>, %arg15: memref<36x256xbf16, #tpu.memory_space<vmem>>, %arg16: memref<16x8xbf16, #tpu.memory_space<vmem>>, %arg17: memref<16x1xf32, #tpu.memory_space<vmem>>, %arg18: memref<1x64x256xbf16, #tpu.memory_space<vmem>>) attributes {dimension_semantics = [#tpu.dimension_semantics<parallel>], iteration_bounds = array<i64: 2>, scalar_prefetch = 0 : i64, scratch_operands = 0 : i64, tpu.core_type = #tpu.core_type<tc>, window_params = [{transform_indices = @transform_0, window_bounds = array<i64: 1, 8, 256>}, {pipeline_mode = #tpu.pipeline_mode<synchronous>, transform_indices = @transform_1, window_bounds = array<i64: 256, 8>}, {pipeline_mode = #tpu.pipeline_mode<synchronous>, transform_indices = @transform_2, window_bounds = array<i64: 8, 256>}, {pipeline_mode = #tpu.pipeline_mode<synchronous>, transform_indices = @transform_3, window_bounds = array<i64: 16, 8>}, {pipeline_mode = #tpu.pipeline_mode<synchronous>, transform_indices = @transform_4, window_bounds = array<i64: 16, 1>}, {pipeline_mode = #tpu.pipeline_mode<synchronous>, transform_indices = @transform_5, window_bounds = array<i64: 256, 8>}, {pipeline_mode = #tpu.pipeline_mode<synchronous>, transform_indices = @transform_6, window_bounds = array<i64: 8, 256>}, {pipeline_mode = #tpu.pipeline_mode<synchronous>, transform_indices = @transform_7, window_bounds = array<i64: 16, 8>}, {pipeline_mode = #tpu.pipeline_mode<synchronous>, transform_indices = @transform_8, window_bounds = array<i64: 16, 1>}, {pipeline_mode = #tpu.pipeline_mode<synchronous>, transform_indices = @transform_9, window_bounds = array<i64: 256, 9>}, {pipeline_mode = #tpu.pipeline_mode<synchronous>, transform_indices = @transform_10, window_bounds = array<i64: 9, 256>}, {pipeline_mode = #tpu.pipeline_mode<synchronous>, transform_indices = @transform_11, window_bounds = array<i64: 16, 8>}, {pipeline_mode = #tpu.pipeline_mode<synchronous>, transform_indices = @transform_12, window_bounds = array<i64: 16, 1>}, {pipeline_mode = #tpu.pipeline_mode<synchronous>, transform_indices = @transform_13, window_bounds = array<i64: 256, 36>}, {pipeline_mode = #tpu.pipeline_mode<synchronous>, transform_indices = @transform_14, window_bounds = array<i64: 36, 256>}, {pipeline_mode = #tpu.pipeline_mode<synchronous>, transform_indices = @transform_15, window_bounds = array<i64: 16, 8>}, {pipeline_mode = #tpu.pipeline_mode<synchronous>, transform_indices = @transform_16, window_bounds = array<i64: 16, 1>}, {transform_indices = @transform_17, window_bounds = array<i64: 1, 64, 256>}]} {
    %c0 = arith.constant 0 : index
    %c0_0 = arith.constant 0 : index
    %c0_1 = arith.constant 0 : index
    %0 = vector.load %arg1[%c0, %c0_0, %c0_1] : memref<1x8x256xbf16, #tpu.memory_space<vmem>>, vector<1x8x256xbf16>
    %1 = vector.shape_cast %0 : vector<1x8x256xbf16> to vector<8x256xbf16>
    %c0_2 = arith.constant 0 : index
    %c0_3 = arith.constant 0 : index
    %2 = vector.load %arg2[%c0_2, %c0_3] : memref<256x8xbf16, #tpu.memory_space<vmem>>, vector<256x8xbf16>
    %cst = arith.constant dense<0.000000e+00> : vector<8x8xf32>
    %3 = tpu.matmul %1, %2, %cst {dimension_numbers = #tpu.dot_dimension_numbers<[1], [0], [0], [1], [0, 0, 1, 1], [], []>} : vector<8x256xbf16>, vector<256x8xbf16>, vector<8x8xf32> -> vector<8x8xf32>
    %c0_4 = arith.constant 0 : index
    %c0_5 = arith.constant 0 : index
    %4 = vector.load %arg4[%c0_4, %c0_5] : memref<16x8xbf16, #tpu.memory_space<vmem>>, vector<16x8xbf16>
    %5 = arith.truncf %3 : vector<8x8xf32> to vector<8x8xbf16>
    %cst_6 = arith.constant dense<0.000000e+00> : vector<16x8xf32>
    %6 = tpu.matmul %4, %5, %cst_6 {dimension_numbers = #tpu.dot_dimension_numbers<[1], [0], [0], [1], [0, 0, 1, 1], [], []>} : vector<16x8xbf16>, vector<8x8xbf16>, vector<16x8xf32> -> vector<16x8xf32>
    %c0_7 = arith.constant 0 : index
    %c0_8 = arith.constant 0 : index
    %7 = vector.load %arg5[%c0_7, %c0_8] : memref<16x1xf32, #tpu.memory_space<vmem>>, vector<16x1xf32>
    %8 = vector.broadcast %7 : vector<16x1xf32> to vector<16x8xf32>
    %9 = arith.addf %6, %8 : vector<16x8xf32>
    %cst_9 = arith.constant 0.000000e+00 : f32
    %10 = vector.broadcast %cst_9 : f32 to vector<16x8xf32>
    %11 = arith.cmpf ogt, %9, %10 : vector<16x8xf32>
    %cst_10 = arith.constant 0.00999999977 : f32
    %12 = vector.broadcast %cst_10 : f32 to vector<16x8xf32>
    %13 = arith.mulf %12, %9 : vector<16x8xf32>
    %14 = arith.select %11, %9, %13 : vector<16x8xi1>, vector<16x8xf32>
    %15 = arith.truncf %14 : vector<16x8xf32> to vector<16x8xbf16>
    %c0_11 = arith.constant 0 : index
    %c0_12 = arith.constant 0 : index
    %16 = vector.load %arg3[%c0_11, %c0_12] : memref<8x256xbf16, #tpu.memory_space<vmem>>, vector<8x256xbf16>
    %cst_13 = arith.constant dense<0.000000e+00> : vector<16x256xf32>
    %17 = tpu.matmul %15, %16, %cst_13 {dimension_numbers = #tpu.dot_dimension_numbers<[1], [0], [0], [1], [0, 0, 1, 1], [], []>} : vector<16x8xbf16>, vector<8x256xbf16>, vector<16x256xf32> -> vector<16x256xf32>
    %18 = arith.truncf %17 : vector<16x256xf32> to vector<16x256xbf16>
    %c0_14 = arith.constant 0 : index
    %c0_15 = arith.constant 0 : index
    %c0_16 = arith.constant 0 : index
    %19 = vector.load %arg18[%c0_14, %c0_15, %c0_16] : memref<1x64x256xbf16, #tpu.memory_space<vmem>>, vector<1x16x256xbf16>
    %20 = vector.shape_cast %19 : vector<1x16x256xbf16> to vector<16x256xbf16>
    %21 = vector.shape_cast %18 : vector<16x256xbf16> to vector<1x16x256xbf16>
    tpu.vector_store %arg18[%c0_14, %c0_15, %c0_16], %21 {strides = array<i32>} : memref<1x64x256xbf16, #tpu.memory_space<vmem>>, vector<1x16x256xbf16>,
    %c0_17 = arith.constant 0 : index
    %c0_18 = arith.constant 0 : index
    %22 = vector.load %arg6[%c0_17, %c0_18] : memref<256x8xbf16, #tpu.memory_space<vmem>>, vector<256x8xbf16>
    %cst_19 = arith.constant dense<0.000000e+00> : vector<8x8xf32>
    %23 = tpu.matmul %1, %22, %cst_19 {dimension_numbers = #tpu.dot_dimension_numbers<[1], [0], [0], [1], [0, 0, 1, 1], [], []>} : vector<8x256xbf16>, vector<256x8xbf16>, vector<8x8xf32> -> vector<8x8xf32>
    %c0_20 = arith.constant 0 : index
    %c0_21 = arith.constant 0 : index
    %24 = vector.load %arg8[%c0_20, %c0_21] : memref<16x8xbf16, #tpu.memory_space<vmem>>, vector<16x8xbf16>
    %25 = arith.truncf %23 : vector<8x8xf32> to vector<8x8xbf16>
    %cst_22 = arith.constant dense<0.000000e+00> : vector<16x8xf32>
    %26 = tpu.matmul %24, %25, %cst_22 {dimension_numbers = #tpu.dot_dimension_numbers<[1], [0], [0], [1], [0, 0, 1, 1], [], []>} : vector<16x8xbf16>, vector<8x8xbf16>, vector<16x8xf32> -> vector<16x8xf32>
    %c0_23 = arith.constant 0 : index
    %c0_24 = arith.constant 0 : index
    %27 = vector.load %arg9[%c0_23, %c0_24] : memref<16x1xf32, #tpu.memory_space<vmem>>, vector<16x1xf32>
    %28 = vector.broadcast %27 : vector<16x1xf32> to vector<16x8xf32>
    %29 = arith.addf %26, %28 : vector<16x8xf32>
    %cst_25 = arith.constant 0.000000e+00 : f32
    %30 = vector.broadcast %cst_25 : f32 to vector<16x8xf32>
    %31 = arith.cmpf ogt, %29, %30 : vector<16x8xf32>
    %cst_26 = arith.constant 0.00999999977 : f32
    %32 = vector.broadcast %cst_26 : f32 to vector<16x8xf32>
    %33 = arith.mulf %32, %29 : vector<16x8xf32>
    %34 = arith.select %31, %29, %33 : vector<16x8xi1>, vector<16x8xf32>
    %35 = arith.truncf %34 : vector<16x8xf32> to vector<16x8xbf16>
    %c0_27 = arith.constant 0 : index
    %c0_28 = arith.constant 0 : index
    %36 = vector.load %arg7[%c0_27, %c0_28] : memref<8x256xbf16, #tpu.memory_space<vmem>>, vector<8x256xbf16>
    %cst_29 = arith.constant dense<0.000000e+00> : vector<16x256xf32>
    %37 = tpu.matmul %35, %36, %cst_29 {dimension_numbers = #tpu.dot_dimension_numbers<[1], [0], [0], [1], [0, 0, 1, 1], [], []>} : vector<16x8xbf16>, vector<8x256xbf16>, vector<16x256xf32> -> vector<16x256xf32>
    %38 = arith.truncf %37 : vector<16x256xf32> to vector<16x256xbf16>
    %c0_30 = arith.constant 0 : index
    %c16 = arith.constant 16 : index
    %c0_31 = arith.constant 0 : index
    %39 = vector.load %arg18[%c0_30, %c16, %c0_31] : memref<1x64x256xbf16, #tpu.memory_space<vmem>>, vector<1x16x256xbf16>
    %40 = vector.shape_cast %39 : vector<1x16x256xbf16> to vector<16x256xbf16>
    %41 = vector.shape_cast %38 : vector<16x256xbf16> to vector<1x16x256xbf16>
    tpu.vector_store %arg18[%c0_30, %c16, %c0_31], %41 {strides = array<i32>} : memref<1x64x256xbf16, #tpu.memory_space<vmem>>, vector<1x16x256xbf16>,
    %c0_32 = arith.constant 0 : index
    %c0_33 = arith.constant 0 : index
    %42 = vector.load %arg10[%c0_32, %c0_33] : memref<256x9xbf16, #tpu.memory_space<vmem>>, vector<256x9xbf16>
    %cst_34 = arith.constant dense<0.000000e+00> : vector<8x9xf32>
    %43 = tpu.matmul %1, %42, %cst_34 {dimension_numbers = #tpu.dot_dimension_numbers<[1], [0], [0], [1], [0, 0, 1, 1], [], []>} : vector<8x256xbf16>, vector<256x9xbf16>, vector<8x9xf32> -> vector<8x9xf32>
    %c0_35 = arith.constant 0 : index
    %c0_36 = arith.constant 0 : index
    %44 = vector.load %arg12[%c0_35, %c0_36] : memref<16x8xbf16, #tpu.memory_space<vmem>>, vector<16x8xbf16>
    %45 = arith.truncf %43 : vector<8x9xf32> to vector<8x9xbf16>
    %cst_37 = arith.constant dense<0.000000e+00> : vector<16x9xf32>
    %46 = tpu.matmul %44, %45, %cst_37 {dimension_numbers = #tpu.dot_dimension_numbers<[1], [0], [0], [1], [0, 0, 1, 1], [], []>} : vector<16x8xbf16>, vector<8x9xbf16>, vector<16x9xf32> -> vector<16x9xf32>
    %c0_38 = arith.constant 0 : index
    %c0_39 = arith.constant 0 : index
    %47 = vector.load %arg13[%c0_38, %c0_39] : memref<16x1xf32, #tpu.memory_space<vmem>>, vector<16x1xf32>
    %48 = vector.broadcast %47 : vector<16x1xf32> to vector<16x9xf32>
    %49 = arith.addf %46, %48 : vector<16x9xf32>
    %cst_40 = arith.constant 0.000000e+00 : f32
    %50 = vector.broadcast %cst_40 : f32 to vector<16x9xf32>
    %51 = arith.cmpf ogt, %49, %50 : vector<16x9xf32>
    %cst_41 = arith.constant 0.00999999977 : f32
    %52 = vector.broadcast %cst_41 : f32 to vector<16x9xf32>
    %53 = arith.mulf %52, %49 : vector<16x9xf32>
    %54 = arith.select %51, %49, %53 : vector<16x9xi1>, vector<16x9xf32>
    %55 = arith.truncf %54 : vector<16x9xf32> to vector<16x9xbf16>
    %c0_42 = arith.constant 0 : index
    %c0_43 = arith.constant 0 : index
    %56 = vector.load %arg11[%c0_42, %c0_43] : memref<9x256xbf16, #tpu.memory_space<vmem>>, vector<9x256xbf16>
    %cst_44 = arith.constant dense<0.000000e+00> : vector<16x256xf32>
    %57 = tpu.matmul %55, %56, %cst_44 {dimension_numbers = #tpu.dot_dimension_numbers<[1], [0], [0], [1], [0, 0, 1, 1], [], []>} : vector<16x9xbf16>, vector<9x256xbf16>, vector<16x256xf32> -> vector<16x256xf32>
    %58 = arith.truncf %57 : vector<16x256xf32> to vector<16x256xbf16>
    %c0_45 = arith.constant 0 : index
    %c32 = arith.constant 32 : index
    %c0_46 = arith.constant 0 : index
    %59 = vector.load %arg18[%c0_45, %c32, %c0_46] : memref<1x64x256xbf16, #tpu.memory_space<vmem>>, vector<1x16x256xbf16>
    %60 = vector.shape_cast %59 : vector<1x16x256xbf16> to vector<16x256xbf16>
    %61 = vector.shape_cast %58 : vector<16x256xbf16> to vector<1x16x256xbf16>
    tpu.vector_store %arg18[%c0_45, %c32, %c0_46], %61 {strides = array<i32>} : memref<1x64x256xbf16, #tpu.memory_space<vmem>>, vector<1x16x256xbf16>,
    %c0_47 = arith.constant 0 : index
    %c0_48 = arith.constant 0 : index
    %62 = vector.load %arg14[%c0_47, %c0_48] : memref<256x36xbf16, #tpu.memory_space<vmem>>, vector<256x36xbf16>
    %cst_49 = arith.constant dense<0.000000e+00> : vector<8x36xf32>
    %63 = tpu.matmul %1, %62, %cst_49 {dimension_numbers = #tpu.dot_dimension_numbers<[1], [0], [0], [1], [0, 0, 1, 1], [], []>} : vector<8x256xbf16>, vector<256x36xbf16>, vector<8x36xf32> -> vector<8x36xf32>
    %c0_50 = arith.constant 0 : index
    %c0_51 = arith.constant 0 : index
    %64 = vector.load %arg16[%c0_50, %c0_51] : memref<16x8xbf16, #tpu.memory_space<vmem>>, vector<16x8xbf16>
    %65 = arith.truncf %63 : vector<8x36xf32> to vector<8x36xbf16>
    %cst_52 = arith.constant dense<0.000000e+00> : vector<16x36xf32>
    %66 = tpu.matmul %64, %65, %cst_52 {dimension_numbers = #tpu.dot_dimension_numbers<[1], [0], [0], [1], [0, 0, 1, 1], [], []>} : vector<16x8xbf16>, vector<8x36xbf16>, vector<16x36xf32> -> vector<16x36xf32>
    %c0_53 = arith.constant 0 : index
    %c0_54 = arith.constant 0 : index
    %67 = vector.load %arg17[%c0_53, %c0_54] : memref<16x1xf32, #tpu.memory_space<vmem>>, vector<16x1xf32>
    %68 = vector.broadcast %67 : vector<16x1xf32> to vector<16x36xf32>
    %69 = arith.addf %66, %68 : vector<16x36xf32>
    %cst_55 = arith.constant 0.000000e+00 : f32
    %70 = vector.broadcast %cst_55 : f32 to vector<16x36xf32>
    %71 = arith.cmpf ogt, %69, %70 : vector<16x36xf32>
    %cst_56 = arith.constant 0.00999999977 : f32
    %72 = vector.broadcast %cst_56 : f32 to vector<16x36xf32>
    %73 = arith.mulf %72, %69 : vector<16x36xf32>
    %74 = arith.select %71, %69, %73 : vector<16x36xi1>, vector<16x36xf32>
    %75 = arith.truncf %74 : vector<16x36xf32> to vector<16x36xbf16>
    %c0_57 = arith.constant 0 : index
    %c0_58 = arith.constant 0 : index
    %76 = vector.load %arg15[%c0_57, %c0_58] : memref<36x256xbf16, #tpu.memory_space<vmem>>, vector<36x256xbf16>
    %cst_59 = arith.constant dense<0.000000e+00> : vector<16x256xf32>
    %77 = tpu.matmul %75, %76, %cst_59 {dimension_numbers = #tpu.dot_dimension_numbers<[1], [0], [0], [1], [0, 0, 1, 1], [], []>} : vector<16x36xbf16>, vector<36x256xbf16>, vector<16x256xf32> -> vector<16x256xf32>
    %78 = arith.truncf %77 : vector<16x256xf32> to vector<16x256xbf16>
    %c0_60 = arith.constant 0 : index
    %c48 = arith.constant 48 : index
    %c0_61 = arith.constant 0 : index
    %79 = vector.load %arg18[%c0_60, %c48, %c0_61] : memref<1x64x256xbf16, #tpu.memory_space<vmem>>, vector<1x16x256xbf16>
    %80 = vector.shape_cast %79 : vector<1x16x256xbf16> to vector<16x256xbf16>
    %81 = vector.shape_cast %78 : vector<16x256xbf16> to vector<1x16x256xbf16>
    tpu.vector_store %arg18[%c0_60, %c48, %c0_61], %81 {strides = array<i32>} : memref<1x64x256xbf16, #tpu.memory_space<vmem>>, vector<1x16x256xbf16>,
    return
  }
  func.func @transform_0(%arg0: i32) -> (i32, i32, i32) {
    %c0_i32 = arith.constant 0 : i32
    %c0_i32_0 = arith.constant 0 : i32
    %c0_i32_1 = arith.constant 0 : i32
    return %arg0, %c0_i32, %c0_i32_0 : i32, i32, i32
  }
  func.func @transform_1(%arg0: i32) -> (i32, i32) {
    %c0_i32 = arith.constant 0 : i32
    %c0_i32_0 = arith.constant 0 : i32
    %c0_i32_1 = arith.constant 0 : i32
    return %c0_i32, %c0_i32_0 : i32, i32
  }
  func.func @transform_2(%arg0: i32) -> (i32, i32) {
    %c0_i32 = arith.constant 0 : i32
    %c0_i32_0 = arith.constant 0 : i32
    %c0_i32_1 = arith.constant 0 : i32
    return %c0_i32, %c0_i32_0 : i32, i32
  }
  func.func @transform_3(%arg0: i32) -> (i32, i32) {
    %c0_i32 = arith.constant 0 : i32
    %c0_i32_0 = arith.constant 0 : i32
    %c0_i32_1 = arith.constant 0 : i32
    return %c0_i32, %c0_i32_0 : i32, i32
  }
  func.func @transform_4(%arg0: i32) -> (i32, i32) {
    %c0_i32 = arith.constant 0 : i32
    %c0_i32_0 = arith.constant 0 : i32
    %c0_i32_1 = arith.constant 0 : i32
    return %c0_i32, %c0_i32_0 : i32, i32
  }
  func.func @transform_5(%arg0: i32) -> (i32, i32) {
    %c0_i32 = arith.constant 0 : i32
    %c0_i32_0 = arith.constant 0 : i32
    %c0_i32_1 = arith.constant 0 : i32
    return %c0_i32, %c0_i32_0 : i32, i32
  }
  func.func @transform_6(%arg0: i32) -> (i32, i32) {
    %c0_i32 = arith.constant 0 : i32
    %c0_i32_0 = arith.constant 0 : i32
    %c0_i32_1 = arith.constant 0 : i32
    return %c0_i32, %c0_i32_0 : i32, i32
  }
  func.func @transform_7(%arg0: i32) -> (i32, i32) {
    %c0_i32 = arith.constant 0 : i32
    %c0_i32_0 = arith.constant 0 : i32
    %c0_i32_1 = arith.constant 0 : i32
    return %c0_i32, %c0_i32_0 : i32, i32
  }
  func.func @transform_8(%arg0: i32) -> (i32, i32) {
    %c0_i32 = arith.constant 0 : i32
    %c0_i32_0 = arith.constant 0 : i32
    %c0_i32_1 = arith.constant 0 : i32
    return %c0_i32, %c0_i32_0 : i32, i32
  }
  func.func @transform_9(%arg0: i32) -> (i32, i32) {
    %c0_i32 = arith.constant 0 : i32
    %c0_i32_0 = arith.constant 0 : i32
    %c0_i32_1 = arith.constant 0 : i32
    return %c0_i32, %c0_i32_0 : i32, i32
  }
  func.func @transform_10(%arg0: i32) -> (i32, i32) {
    %c0_i32 = arith.constant 0 : i32
    %c0_i32_0 = arith.constant 0 : i32
    %c0_i32_1 = arith.constant 0 : i32
    return %c0_i32, %c0_i32_0 : i32, i32
  }
  func.func @transform_11(%arg0: i32) -> (i32, i32) {
    %c0_i32 = arith.constant 0 : i32
    %c0_i32_0 = arith.constant 0 : i32
    %c0_i32_1 = arith.constant 0 : i32
    return %c0_i32, %c0_i32_0 : i32, i32
  }
  func.func @transform_12(%arg0: i32) -> (i32, i32) {
    %c0_i32 = arith.constant 0 : i32
    %c0_i32_0 = arith.constant 0 : i32
    %c0_i32_1 = arith.constant 0 : i32
    return %c0_i32, %c0_i32_0 : i32, i32
  }
  func.func @transform_13(%arg0: i32) -> (i32, i32) {
    %c0_i32 = arith.constant 0 : i32
    %c0_i32_0 = arith.constant 0 : i32
    %c0_i32_1 = arith.constant 0 : i32
    return %c0_i32, %c0_i32_0 : i32, i32
  }
  func.func @transform_14(%arg0: i32) -> (i32, i32) {
    %c0_i32 = arith.constant 0 : i32
    %c0_i32_0 = arith.constant 0 : i32
    %c0_i32_1 = arith.constant 0 : i32
    return %c0_i32, %c0_i32_0 : i32, i32
  }
  func.func @transform_15(%arg0: i32) -> (i32, i32) {
    %c0_i32 = arith.constant 0 : i32
    %c0_i32_0 = arith.constant 0 : i32
    %c0_i32_1 = arith.constant 0 : i32
    return %c0_i32, %c0_i32_0 : i32, i32
  }
  func.func @transform_16(%arg0: i32) -> (i32, i32) {
    %c0_i32 = arith.constant 0 : i32
    %c0_i32_0 = arith.constant 0 : i32
    %c0_i32_1 = arith.constant 0 : i32
    return %c0_i32, %c0_i32_0 : i32, i32
  }
  func.func @transform_17(%arg0: i32) -> (i32, i32, i32) {
    %c0_i32 = arith.constant 0 : i32
    %c0_i32_0 = arith.constant 0 : i32
    %c0_i32_1 = arith.constant 0 : i32
    return %arg0, %c0_i32, %c0_i32_0 : i32, i32, i32
  }
}

</mosaic_0001>

<llo_original>
// kernel: tpu_custom_call.1
$region0: #{tpu_custom_call.1}
  #allocation0 [shape = 'u32[]', space=smem, size = 0x4, offset = 0x4, fixed_abs, tag = 'smem constant byte address 0x4 - core index']
  #allocation1 [shape = 'u32[72,128]{1,0:T(1,128)}', space=vmem, size = 0x9000, scoped, tag = 'internal scratch']
  %s0 = inlined_call_operand.vmem [shape: bf16[2,8,256], index: 0, kind: input, shape index: {}]
  %s1 = inlined_call_operand.vmem [shape: bf16[256,8], index: 1, kind: input, shape index: {}]
  %s2 = inlined_call_operand.vmem [shape: bf16[8,256], index: 2, kind: input, shape index: {}]
  %s3 = inlined_call_operand.vmem [shape: bf16[16,8], index: 3, kind: input, shape index: {}]
  %s4 = inlined_call_operand.vmem [shape: f32[16,1], index: 4, kind: input, shape index: {}]
  %s5 = inlined_call_operand.vmem [shape: bf16[256,8], index: 5, kind: input, shape index: {}]
  %s6 = inlined_call_operand.vmem [shape: bf16[8,256], index: 6, kind: input, shape index: {}]
  %s7 = inlined_call_operand.vmem [shape: bf16[16,8], index: 7, kind: input, shape index: {}]
  %s8 = inlined_call_operand.vmem [shape: f32[16,1], index: 8, kind: input, shape index: {}]
  %s9 = inlined_call_operand.vmem [shape: bf16[256,9], index: 9, kind: input, shape index: {}]
  %s10 = inlined_call_operand.vmem [shape: bf16[9,256], index: 10, kind: input, shape index: {}]
  %s11 = inlined_call_operand.vmem [shape: bf16[16,8], index: 11, kind: input, shape index: {}]
  %s12 = inlined_call_operand.vmem [shape: f32[16,1], index: 12, kind: input, shape index: {}]
  %s13 = inlined_call_operand.vmem [shape: bf16[256,36], index: 13, kind: input, shape index: {}]
  %s14 = inlined_call_operand.vmem [shape: bf16[36,256], index: 14, kind: input, shape index: {}]
  %s15 = inlined_call_operand.vmem [shape: bf16[16,8], index: 15, kind: input, shape index: {}]
  %s16 = inlined_call_operand.vmem [shape: f32[16,1], index: 16, kind: input, shape index: {}]
  %s17 = inlined_call_operand.hbm [shape: bf16[2,64,256], index: 17, kind: output, shape index: {}]
  %s18 = sld [smem:[#allocation0]]
  $region101: #{tpu_custom_call.1} parent=0
    _
  %s20 = ssub.s32 1, %s18
  %s21 = scalar_select 0, %s20, %s18
  $region1: #{tpu_custom_call.1} parent=0
    #allocation2 [shape = 'u8[65536]{0}', space=vmem, size = 0x10000, scoped, tag = 'output window, operand 0']
    #allocation3 [shape = 's32[2]{0}', space=sflag, size = 0x8, scoped, tag = 'scoped memory for tpu_custom_call.1']
    %22 = vsyncpa [#allocation3], 0
    %s23 = scalar_lea.sflag [#allocation3], 1
    %24 = vsyncpa %s23, 0
    loop: start=0, step=1, limit=4
    $region2: #{tpu_custom_call.1} parent=1 // loop_pre_header
      _
    $region3: #{tpu_custom_call.1} parent=1 // loop_header
      %s26 = sphi 0, %s30
      %p27 = scmp.ge.s32.totalorder %s26, 4
      %s36 = sphi 0, %s38
      %s39 = sphi 0, %s36
      %s40 = sphi 0, %s39
      %s56 = sphi 0, %s40
      %s60 = sphi 0, %s60
      %s62 = sphi 0, %s60
      %s63 = sphi 0, %s62
      %s77 = sphi 0, %s63
      %s81 = sphi 0, %s81
      %s83 = sphi 0, %s81
      %s84 = sphi 0, %s83
      %s98 = sphi 0, %s84
      %s102 = sphi 0, %s102
      %s104 = sphi 0, %s102
      %s105 = sphi 0, %s104
      %s119 = sphi 0, %s105
      %s123 = sphi 0, %s123
      %s125 = sphi 0, %s123
      %s126 = sphi 0, %s125
      %s140 = sphi 0, %s126
      %s144 = sphi 0, %s144
      %s146 = sphi 0, %s144
      %s147 = sphi 0, %s146
      %s161 = sphi 0, %s147
      %s165 = sphi 0, %s165
      %s167 = sphi 0, %s165
      %s168 = sphi 0, %s167
      %s182 = sphi 0, %s168
      %s186 = sphi 0, %s186
      %s188 = sphi 0, %s186
      %s189 = sphi 0, %s188
      %s203 = sphi 0, %s189
      %s207 = sphi 0, %s207
      %s209 = sphi 0, %s207
      %s210 = sphi 0, %s209
      %s224 = sphi 0, %s210
      %s228 = sphi 0, %s228
      %s230 = sphi 0, %s228
      %s231 = sphi 0, %s230
      %s245 = sphi 0, %s231
      %s249 = sphi 0, %s249
      %s251 = sphi 0, %s249
      %s252 = sphi 0, %s251
      %s266 = sphi 0, %s252
      %s270 = sphi 0, %s270
      %s272 = sphi 0, %s270
      %s273 = sphi 0, %s272
      %s287 = sphi 0, %s273
      %s291 = sphi 0, %s291
      %s293 = sphi 0, %s291
      %s294 = sphi 0, %s293
      %s308 = sphi 0, %s294
      %s312 = sphi 0, %s312
      %s314 = sphi 0, %s312
      %s315 = sphi 0, %s314
      %s329 = sphi 0, %s315
      %s333 = sphi 0, %s333
      %s335 = sphi 0, %s333
      %s336 = sphi 0, %s335
      %s350 = sphi 0, %s336
      %s354 = sphi 0, %s354
      %s356 = sphi 0, %s354
      %s357 = sphi 0, %s356
      %s371 = sphi 0, %s357
      %s375 = sphi 0, %s375
      %s377 = sphi 0, %s375
      %s378 = sphi 0, %s377
      %s392 = sphi 0, %s378
      %s398 = sphi 0, %s400
      %s401 = sphi 0, %s398
      %s402 = sphi 0, %s401
      %s418 = sphi 0, %s402
    $region4: #{tpu_custom_call.1} parent=1 // loop_header_branch
      %29 = sbr.rel (%p27) target = $region8
    $region5: #{tpu_custom_call.1} parent=1 // loop_body
      %s31 = ssub.s32 %s26, 1
      %s32 = ssub.s32 %s26, 2
      %s33 = sadd.s32 %s26, 1
      %s34 = ssub.s32 %s26, %s33
      %p35 = scmp.eq.s32.totalorder %s34, 0
      %s37 = sadd.s32 %s36, 1
      %s38 = scalar_select %p35, %s36, %s37
      %p41 = pneg %p35
      %p42 = scmp.eq.s32.totalorder %s26, 1
      %p43 = por %p41, %p42
      %p44 = scmp.ne.s32.totalorder %s36, %s39
      %p45 = scmp.eq.s32.totalorder %s26, 0
      %p46 = por %p44, %p45
      %p47 = scmp.ne.s32.totalorder %s36, %s39
      %p48 = scmp.eq.s32.totalorder %s31, 1
      %p49 = por %p47, %p48
      %p50 = scmp.ne.s32.totalorder %s39, %s40
      %p51 = scmp.eq.s32.totalorder %s31, 0
      %p52 = por %p50, %p51
      %p53 = scmp.ne.s32.totalorder %s39, %s40
      %p54 = scmp.eq.s32.totalorder %s32, 1
      %p55 = por %p53, %p54
      %p57 = scmp.ne.s32.totalorder %s40, %s56
      %p58 = scmp.eq.s32.totalorder %s32, 0
      %p59 = por %p57, %p58
      %s61 = sadd.s32 %s60, 1
      %p64 = scmp.eq.s32.totalorder %s26, 1
      %p65 = scmp.ne.s32.totalorder %s60, %s62
      %p66 = scmp.eq.s32.totalorder %s26, 0
      %p67 = por %p65, %p66
      %p68 = scmp.ne.s32.totalorder %s60, %s62
      %p69 = scmp.eq.s32.totalorder %s31, 1
      %p70 = por %p68, %p69
      %p71 = scmp.ne.s32.totalorder %s62, %s63
      %p72 = scmp.eq.s32.totalorder %s31, 0
      %p73 = por %p71, %p72
      %p74 = scmp.ne.s32.totalorder %s62, %s63
      %p75 = scmp.eq.s32.totalorder %s32, 1
      %p76 = por %p74, %p75
      %p78 = scmp.ne.s32.totalorder %s63, %s77
      %p79 = scmp.eq.s32.totalorder %s32, 0
      %p80 = por %p78, %p79
      %s82 = sadd.s32 %s81, 1
      %p85 = scmp.eq.s32.totalorder %s26, 1
      %p86 = scmp.ne.s32.totalorder %s81, %s83
      %p87 = scmp.eq.s32.totalorder %s26, 0
      %p88 = por %p86, %p87
      %p89 = scmp.ne.s32.totalorder %s81, %s83
      %p90 = scmp.eq.s32.totalorder %s31, 1
      %p91 = por %p89, %p90
      %p92 = scmp.ne.s32.totalorder %s83, %s84
      %p93 = scmp.eq.s32.totalorder %s31, 0
      %p94 = por %p92, %p93
      %p95 = scmp.ne.s32.totalorder %s83, %s84
      %p96 = scmp.eq.s32.totalorder %s32, 1
      %p97 = por %p95, %p96
      %p99 = scmp.ne.s32.totalorder %s84, %s98
      %p100 = scmp.eq.s32.totalorder %s32, 0
      %p101 = por %p99, %p100
      %s103 = sadd.s32 %s102, 1
      %p106 = scmp.eq.s32.totalorder %s26, 1
      %p107 = scmp.ne.s32.totalorder %s102, %s104
      %p108 = scmp.eq.s32.totalorder %s26, 0
      %p109 = por %p107, %p108
      %p110 = scmp.ne.s32.totalorder %s102, %s104
      %p111 = scmp.eq.s32.totalorder %s31, 1
      %p112 = por %p110, %p111
      %p113 = scmp.ne.s32.totalorder %s104, %s105
      %p114 = scmp.eq.s32.totalorder %s31, 0
      %p115 = por %p113, %p114
      %p116 = scmp.ne.s32.totalorder %s104, %s105
      %p117 = scmp.eq.s32.totalorder %s32, 1
      %p118 = por %p116, %p117
      %p120 = scmp.ne.s32.totalorder %s105, %s119
      %p121 = scmp.eq.s32.totalorder %s32, 0
      %p122 = por %p120, %p121
      %s124 = sadd.s32 %s123, 1
      %p127 = scmp.eq.s32.totalorder %s26, 1
      %p128 = scmp.ne.s32.totalorder %s123, %s125
      %p129 = scmp.eq.s32.totalorder %s26, 0
      %p130 = por %p128, %p129
      %p131 = scmp.ne.s32.totalorder %s123, %s125
      %p132 = scmp.eq.s32.totalorder %s31, 1
      %p133 = por %p131, %p132
      %p134 = scmp.ne.s32.totalorder %s125, %s126
      %p135 = scmp.eq.s32.totalorder %s31, 0
      %p136 = por %p134, %p135
      %p137 = scmp.ne.s32.totalorder %s125, %s126
      %p138 = scmp.eq.s32.totalorder %s32, 1
      %p139 = por %p137, %p138
      %p141 = scmp.ne.s32.totalorder %s126, %s140
      %p142 = scmp.eq.s32.totalorder %s32, 0
      %p143 = por %p141, %p142
      %s145 = sadd.s32 %s144, 1
      %p148 = scmp.eq.s32.totalorder %s26, 1
      %p149 = scmp.ne.s32.totalorder %s144, %s146
      %p150 = scmp.eq.s32.totalorder %s26, 0
      %p151 = por %p149, %p150
      %p152 = scmp.ne.s32.totalorder %s144, %s146
      %p153 = scmp.eq.s32.totalorder %s31, 1
      %p154 = por %p152, %p153
      %p155 = scmp.ne.s32.totalorder %s146, %s147
      %p156 = scmp.eq.s32.totalorder %s31, 0
      %p157 = por %p155, %p156
      %p158 = scmp.ne.s32.totalorder %s146, %s147
      %p159 = scmp.eq.s32.totalorder %s32, 1
      %p160 = por %p158, %p159
      %p162 = scmp.ne.s32.totalorder %s147, %s161
      %p163 = scmp.eq.s32.totalorder %s32, 0
      %p164 = por %p162, %p163
      %s166 = sadd.s32 %s165, 1
      %p169 = scmp.eq.s32.totalorder %s26, 1
      %p170 = scmp.ne.s32.totalorder %s165, %s167
      %p171 = scmp.eq.s32.totalorder %s26, 0
      %p172 = por %p170, %p171
      %p173 = scmp.ne.s32.totalorder %s165, %s167
      %p174 = scmp.eq.s32.totalorder %s31, 1
      %p175 = por %p173, %p174
      %p176 = scmp.ne.s32.totalorder %s167, %s168
      %p177 = scmp.eq.s32.totalorder %s31, 0
      %p178 = por %p176, %p177
      %p179 = scmp.ne.s32.totalorder %s167, %s168
      %p180 = scmp.eq.s32.totalorder %s32, 1
      %p181 = por %p179, %p180
      %p183 = scmp.ne.s32.totalorder %s168, %s182
      %p184 = scmp.eq.s32.totalorder %s32, 0
      %p185 = por %p183, %p184
      %s187 = sadd.s32 %s186, 1
      %p190 = scmp.eq.s32.totalorder %s26, 1
      %p191 = scmp.ne.s32.totalorder %s186, %s188
      %p192 = scmp.eq.s32.totalorder %s26, 0
      %p193 = por %p191, %p192
      %p194 = scmp.ne.s32.totalorder %s186, %s188
      %p195 = scmp.eq.s32.totalorder %s31, 1
      %p196 = por %p194, %p195
      %p197 = scmp.ne.s32.totalorder %s188, %s189
      %p198 = scmp.eq.s32.totalorder %s31, 0
      %p199 = por %p197, %p198
      %p200 = scmp.ne.s32.totalorder %s188, %s189
      %p201 = scmp.eq.s32.totalorder %s32, 1
      %p202 = por %p200, %p201
      %p204 = scmp.ne.s32.totalorder %s189, %s203
      %p205 = scmp.eq.s32.totalorder %s32, 0
      %p206 = por %p204, %p205
      %s208 = sadd.s32 %s207, 1
      %p211 = scmp.eq.s32.totalorder %s26, 1
      %p212 = scmp.ne.s32.totalorder %s207, %s209
      %p213 = scmp.eq.s32.totalorder %s26, 0
      %p214 = por %p212, %p213
      %p215 = scmp.ne.s32.totalorder %s207, %s209
      %p216 = scmp.eq.s32.totalorder %s31, 1
      %p217 = por %p215, %p216
      %p218 = scmp.ne.s32.totalorder %s209, %s210
      %p219 = scmp.eq.s32.totalorder %s31, 0
      %p220 = por %p218, %p219
      %p221 = scmp.ne.s32.totalorder %s209, %s210
      %p222 = scmp.eq.s32.totalorder %s32, 1
      %p223 = por %p221, %p222
      %p225 = scmp.ne.s32.totalorder %s210, %s224
      %p226 = scmp.eq.s32.totalorder %s32, 0
      %p227 = por %p225, %p226
      %s229 = sadd.s32 %s228, 1
      %p232 = scmp.eq.s32.totalorder %s26, 1
      %p233 = scmp.ne.s32.totalorder %s228, %s230
      %p234 = scmp.eq.s32.totalorder %s26, 0
      %p235 = por %p233, %p234
      %p236 = scmp.ne.s32.totalorder %s228, %s230
      %p237 = scmp.eq.s32.totalorder %s31, 1
      %p238 = por %p236, %p237
      %p239 = scmp.ne.s32.totalorder %s230, %s231
      %p240 = scmp.eq.s32.totalorder %s31, 0
      %p241 = por %p239, %p240
      %p242 = scmp.ne.s32.totalorder %s230, %s231
      %p243 = scmp.eq.s32.totalorder %s32, 1
      %p244 = por %p242, %p243
      %p246 = scmp.ne.s32.totalorder %s231, %s245
      %p247 = scmp.eq.s32.totalorder %s32, 0
      %p248 = por %p246, %p247
      %s250 = sadd.s32 %s249, 1
      %p253 = scmp.eq.s32.totalorder %s26, 1
      %p254 = scmp.ne.s32.totalorder %s249, %s251
      %p255 = scmp.eq.s32.totalorder %s26, 0
      %p256 = por %p254, %p255
      %p257 = scmp.ne.s32.totalorder %s249, %s251
      %p258 = scmp.eq.s32.totalorder %s31, 1
      %p259 = por %p257, %p258
      %p260 = scmp.ne.s32.totalorder %s251, %s252
      %p261 = scmp.eq.s32.totalorder %s31, 0
      %p262 = por %p260, %p261
      %p263 = scmp.ne.s32.totalorder %s251, %s252
      %p264 = scmp.eq.s32.totalorder %s32, 1
      %p265 = por %p263, %p264
      %p267 = scmp.ne.s32.totalorder %s252, %s266
      %p268 = scmp.eq.s32.totalorder %s32, 0
      %p269 = por %p267, %p268
      %s271 = sadd.s32 %s270, 1
      %p274 = scmp.eq.s32.totalorder %s26, 1
      %p275 = scmp.ne.s32.totalorder %s270, %s272
      %p276 = scmp.eq.s32.totalorder %s26, 0
      %p277 = por %p275, %p276
      %p278 = scmp.ne.s32.totalorder %s270, %s272
      %p279 = scmp.eq.s32.totalorder %s31, 1
      %p280 = por %p278, %p279
      %p281 = scmp.ne.s32.totalorder %s272, %s273
      %p282 = scmp.eq.s32.totalorder %s31, 0
      %p283 = por %p281, %p282
      %p284 = scmp.ne.s32.totalorder %s272, %s273
      %p285 = scmp.eq.s32.totalorder %s32, 1
      %p286 = por %p284, %p285
      %p288 = scmp.ne.s32.totalorder %s273, %s287
      %p289 = scmp.eq.s32.totalorder %s32, 0
      %p290 = por %p288, %p289
      %s292 = sadd.s32 %s291, 1
      %p295 = scmp.eq.s32.totalorder %s26, 1
      %p296 = scmp.ne.s32.totalorder %s291, %s293
      %p297 = scmp.eq.s32.totalorder %s26, 0
      %p298 = por %p296, %p297
      %p299 = scmp.ne.s32.totalorder %s291, %s293
      %p300 = scmp.eq.s32.totalorder %s31, 1
      %p301 = por %p299, %p300
      %p302 = scmp.ne.s32.totalorder %s293, %s294
      %p303 = scmp.eq.s32.totalorder %s31, 0
      %p304 = por %p302, %p303
      %p305 = scmp.ne.s32.totalorder %s293, %s294
      %p306 = scmp.eq.s32.totalorder %s32, 1
      %p307 = por %p305, %p306
      %p309 = scmp.ne.s32.totalorder %s294, %s308
      %p310 = scmp.eq.s32.totalorder %s32, 0
      %p311 = por %p309, %p310
      %s313 = sadd.s32 %s312, 1
      %p316 = scmp.eq.s32.totalorder %s26, 1
      %p317 = scmp.ne.s32.totalorder %s312, %s314
      %p318 = scmp.eq.s32.totalorder %s26, 0
      %p319 = por %p317, %p318
      %p320 = scmp.ne.s32.totalorder %s312, %s314
      %p321 = scmp.eq.s32.totalorder %s31, 1
      %p322 = por %p320, %p321
      %p323 = scmp.ne.s32.totalorder %s314, %s315
      %p324 = scmp.eq.s32.totalorder %s31, 0
      %p325 = por %p323, %p324
      %p326 = scmp.ne.s32.totalorder %s314, %s315
      %p327 = scmp.eq.s32.totalorder %s32, 1
      %p328 = por %p326, %p327
      %p330 = scmp.ne.s32.totalorder %s315, %s329
      %p331 = scmp.eq.s32.totalorder %s32, 0
      %p332 = por %p330, %p331
      %s334 = sadd.s32 %s333, 1
      %p337 = scmp.eq.s32.totalorder %s26, 1
      %p338 = scmp.ne.s32.totalorder %s333, %s335
      %p339 = scmp.eq.s32.totalorder %s26, 0
      %p340 = por %p338, %p339
      %p341 = scmp.ne.s32.totalorder %s333, %s335
      %p342 = scmp.eq.s32.totalorder %s31, 1
      %p343 = por %p341, %p342
      %p344 = scmp.ne.s32.totalorder %s335, %s336
      %p345 = scmp.eq.s32.totalorder %s31, 0
      %p346 = por %p344, %p345
      %p347 = scmp.ne.s32.totalorder %s335, %s336
      %p348 = scmp.eq.s32.totalorder %s32, 1
      %p349 = por %p347, %p348
      %p351 = scmp.ne.s32.totalorder %s336, %s350
      %p352 = scmp.eq.s32.totalorder %s32, 0
      %p353 = por %p351, %p352
      %s355 = sadd.s32 %s354, 1
      %p358 = scmp.eq.s32.totalorder %s26, 1
      %p359 = scmp.ne.s32.totalorder %s354, %s356
      %p360 = scmp.eq.s32.totalorder %s26, 0
      %p361 = por %p359, %p360
      %p362 = scmp.ne.s32.totalorder %s354, %s356
      %p363 = scmp.eq.s32.totalorder %s31, 1
      %p364 = por %p362, %p363
      %p365 = scmp.ne.s32.totalorder %s356, %s357
      %p366 = scmp.eq.s32.totalorder %s31, 0
      %p367 = por %p365, %p366
      %p368 = scmp.ne.s32.totalorder %s356, %s357
      %p369 = scmp.eq.s32.totalorder %s32, 1
      %p370 = por %p368, %p369
      %p372 = scmp.ne.s32.totalorder %s357, %s371
      %p373 = scmp.eq.s32.totalorder %s32, 0
      %p374 = por %p372, %p373
      %s376 = sadd.s32 %s375, 1
      %p379 = scmp.eq.s32.totalorder %s26, 1
      %p380 = scmp.ne.s32.totalorder %s375, %s377
      %p381 = scmp.eq.s32.totalorder %s26, 0
      %p382 = por %p380, %p381
      %p383 = scmp.ne.s32.totalorder %s375, %s377
      %p384 = scmp.eq.s32.totalorder %s31, 1
      %p385 = por %p383, %p384
      %p386 = scmp.ne.s32.totalorder %s377, %s378
      %p387 = scmp.eq.s32.totalorder %s31, 0
      %p388 = por %p386, %p387
      %p389 = scmp.ne.s32.totalorder %s377, %s378
      %p390 = scmp.eq.s32.totalorder %s32, 1
      %p391 = por %p389, %p390
      %p393 = scmp.ne.s32.totalorder %s378, %s392
      %p394 = scmp.eq.s32.totalorder %s32, 0
      %p395 = por %p393, %p394
      %s396 = ssub.s32 %s26, %s33
      %p397 = scmp.eq.s32.totalorder %s396, 0
      %s399 = sadd.s32 %s398, 1
      %s400 = scalar_select %p397, %s398, %s399
      %p403 = pneg %p397
      %p404 = scmp.eq.s32.totalorder %s26, 1
      %p405 = por %p403, %p404
      %p406 = scmp.ne.s32.totalorder %s398, %s401
      %p407 = scmp.eq.s32.totalorder %s26, 0
      %p408 = por %p406, %p407
      %p409 = scmp.ne.s32.totalorder %s398, %s401
      %p410 = scmp.eq.s32.totalorder %s31, 1
      %p411 = por %p409, %p410
      %p412 = scmp.ne.s32.totalorder %s401, %s402
      %p413 = scmp.eq.s32.totalorder %s31, 0
      %p414 = por %p412, %p413
      %p415 = scmp.ne.s32.totalorder %s401, %s402
      %p416 = scmp.eq.s32.totalorder %s32, 1
      %p417 = por %p415, %p416
      %p419 = scmp.ne.s32.totalorder %s402, %s418
      %p420 = scmp.eq.s32.totalorder %s32, 0
      %p421 = por %p419, %p420
      %p422 = scmp.le.s32.totalorder 1, %s26
      %p423 = scmp.lt.s32.totalorder %s26, 3
      %p424 = pnand %p422, %p423
      %p425 = pneg %p424
      // Predicated region
      $region9: #{tpu_custom_call.1} parent=5 // pred_check
        _
      $region10: #{tpu_custom_call.1} parent=5 // pred_check_branch
        %427 = sbr.rel (%p424) target = $region12
      $region11: #{tpu_custom_call.1} parent=5 // pred_region
        %s428 = ssub.s32 %s26, 1
        // Predicated region
        $region13: #{tpu_custom_call.1} parent=11 // pred_check
          %p429 = pneg %p73
        $region14: #{tpu_custom_call.1} parent=11 // pred_check_branch
          %431 = sbr.rel (%p429) target = $region16
        $region15: #{tpu_custom_call.1} parent=11 // pred_region
          _
        $region16: #{tpu_custom_call.1} parent=11 // pred_fallthru
          _
        // Predicated region
        $region17: #{tpu_custom_call.1} parent=11 // pred_check
          %p432 = pneg %p94
        $region18: #{tpu_custom_call.1} parent=11 // pred_check_branch
          %434 = sbr.rel (%p432) target = $region20
        $region19: #{tpu_custom_call.1} parent=11 // pred_region
          _
        $region20: #{tpu_custom_call.1} parent=11 // pred_fallthru
          _
        // Predicated region
        $region21: #{tpu_custom_call.1} parent=11 // pred_check
          %p435 = pneg %p115
        $region22: #{tpu_custom_call.1} parent=11 // pred_check_branch
          %437 = sbr.rel (%p435) target = $region24
        $region23: #{tpu_custom_call.1} parent=11 // pred_region
          _
        $region24: #{tpu_custom_call.1} parent=11 // pred_fallthru
          _
        // Predicated region
        $region25: #{tpu_custom_call.1} parent=11 // pred_check
          %p438 = pneg %p136
        $region26: #{tpu_custom_call.1} parent=11 // pred_check_branch
          %440 = sbr.rel (%p438) target = $region28
        $region27: #{tpu_custom_call.1} parent=11 // pred_region
          _
        $region28: #{tpu_custom_call.1} parent=11 // pred_fallthru
          _
        // Predicated region
        $region29: #{tpu_custom_call.1} parent=11 // pred_check
          %p441 = pneg %p157
        $region30: #{tpu_custom_call.1} parent=11 // pred_check_branch
          %443 = sbr.rel (%p441) target = $region32
        $region31: #{tpu_custom_call.1} parent=11 // pred_region
          _
        $region32: #{tpu_custom_call.1} parent=11 // pred_fallthru
          _
        // Predicated region
        $region33: #{tpu_custom_call.1} parent=11 // pred_check
          %p444 = pneg %p178
        $region34: #{tpu_custom_call.1} parent=11 // pred_check_branch
          %446 = sbr.rel (%p444) target = $region36
        $region35: #{tpu_custom_call.1} parent=11 // pred_region
          _
        $region36: #{tpu_custom_call.1} parent=11 // pred_fallthru
          _
        // Predicated region
        $region37: #{tpu_custom_call.1} parent=11 // pred_check
          %p447 = pneg %p199
        $region38: #{tpu_custom_call.1} parent=11 // pred_check_branch
          %449 = sbr.rel (%p447) target = $region40
        $region39: #{tpu_custom_call.1} parent=11 // pred_region
          _
        $region40: #{tpu_custom_call.1} parent=11 // pred_fallthru
          _
        // Predicated region
        $region41: #{tpu_custom_call.1} parent=11 // pred_check
          %p450 = pneg %p220
        $region42: #{tpu_custom_call.1} parent=11 // pred_check_branch
          %452 = sbr.rel (%p450) target = $region44
        $region43: #{tpu_custom_call.1} parent=11 // pred_region
          _
        $region44: #{tpu_custom_call.1} parent=11 // pred_fallthru
          _
        // Predicated region
        $region45: #{tpu_custom_call.1} parent=11 // pred_check
          %p453 = pneg %p241
        $region46: #{tpu_custom_call.1} parent=11 // pred_check_branch
          %455 = sbr.rel (%p453) target = $region48
        $region47: #{tpu_custom_call.1} parent=11 // pred_region
          _
        $region48: #{tpu_custom_call.1} parent=11 // pred_fallthru
          _
        // Predicated region
        $region49: #{tpu_custom_call.1} parent=11 // pred_check
          %p456 = pneg %p262
        $region50: #{tpu_custom_call.1} parent=11 // pred_check_branch
          %458 = sbr.rel (%p456) target = $region52
        $region51: #{tpu_custom_call.1} parent=11 // pred_region
          _
        $region52: #{tpu_custom_call.1} parent=11 // pred_fallthru
          _
        // Predicated region
        $region53: #{tpu_custom_call.1} parent=11 // pred_check
          %p459 = pneg %p283
        $region54: #{tpu_custom_call.1} parent=11 // pred_check_branch
          %461 = sbr.rel (%p459) target = $region56
        $region55: #{tpu_custom_call.1} parent=11 // pred_region
          _
        $region56: #{tpu_custom_call.1} parent=11 // pred_fallthru
          _
        // Predicated region
        $region57: #{tpu_custom_call.1} parent=11 // pred_check
          %p462 = pneg %p304
        $region58: #{tpu_custom_call.1} parent=11 // pred_check_branch
          %464 = sbr.rel (%p462) target = $region60
        $region59: #{tpu_custom_call.1} parent=11 // pred_region
          _
        $region60: #{tpu_custom_call.1} parent=11 // pred_fallthru
          _
        // Predicated region
        $region61: #{tpu_custom_call.1} parent=11 // pred_check
          %p465 = pneg %p325
        $region62: #{tpu_custom_call.1} parent=11 // pred_check_branch
          %467 = sbr.rel (%p465) target = $region64
        $region63: #{tpu_custom_call.1} parent=11 // pred_region
          _
        $region64: #{tpu_custom_call.1} parent=11 // pred_fallthru
          _
        // Predicated region
        $region65: #{tpu_custom_call.1} parent=11 // pred_check
          %p468 = pneg %p346
        $region66: #{tpu_custom_call.1} parent=11 // pred_check_branch
          %470 = sbr.rel (%p468) target = $region68
        $region67: #{tpu_custom_call.1} parent=11 // pred_region
          _
        $region68: #{tpu_custom_call.1} parent=11 // pred_fallthru
          _
        // Predicated region
        $region69: #{tpu_custom_call.1} parent=11 // pred_check
          %p471 = pneg %p367
        $region70: #{tpu_custom_call.1} parent=11 // pred_check_branch
          %473 = sbr.rel (%p471) target = $region72
        $region71: #{tpu_custom_call.1} parent=11 // pred_region
          _
        $region72: #{tpu_custom_call.1} parent=11 // pred_fallthru
          _
        // Predicated region
        $region73: #{tpu_custom_call.1} parent=11 // pred_check
          %p474 = pneg %p388
        $region74: #{tpu_custom_call.1} parent=11 // pred_check_branch
          %476 = sbr.rel (%p474) target = $region76
        $region75: #{tpu_custom_call.1} parent=11 // pred_region
          _
        $region76: #{tpu_custom_call.1} parent=11 // pred_fallthru
          _
      $region12: #{tpu_custom_call.1} parent=5 // pred_fallthru
        _
      %p477 = scmp.lt.s32.totalorder %s26, 2
      // Predicated region
      $region77: #{tpu_custom_call.1} parent=5 // pred_check
        %p478 = pneg %p477
      $region78: #{tpu_custom_call.1} parent=5 // pred_check_branch
        %480 = sbr.rel (%p478) target = $region80
      $region79: #{tpu_custom_call.1} parent=5 // pred_region
        // Predicated region
        $region81: #{tpu_custom_call.1} parent=79 // pred_check
          %p481 = pneg %p46
        $region82: #{tpu_custom_call.1} parent=79 // pred_check_branch
          %483 = sbr.rel (%p481) target = $region84
        $region83: #{tpu_custom_call.1} parent=79 // pred_region
          %p484 = scmp.lt.s32.totalorder %s26, 1
          %s485 = scalar_select %p484, %s26, 1
          %s486 = smul.addr %s485, 2
          %s487 = smul.addr %s486, 4
          %s488 = scalar_lea.vmem %s0, %s487
        $region84: #{tpu_custom_call.1} parent=79 // pred_fallthru
          _
      $region80: #{tpu_custom_call.1} parent=5 // pred_fallthru
        _
      %p489 = scmp.le.s32.totalorder 1, %s26
      %p490 = scmp.lt.s32.totalorder %s26, 3
      %p491 = pnand %p489, %p490
      %p492 = pneg %p491
      // Predicated region
      $region85: #{tpu_custom_call.1} parent=5 // pred_check
        _
      $region86: #{tpu_custom_call.1} parent=5 // pred_check_branch
        %494 = sbr.rel (%p491) target = $region88
      $region87: #{tpu_custom_call.1} parent=5 // pred_region
        %s495 = ssub.s32 %s26, 1
        %p496 = scmp.lt.s32.totalorder %s31, 1
        %s497 = scalar_select %p496, %s31, 1
        %s498 = smul.addr %s497, 2
        %s499 = smul.addr %s498, 4
        %s500 = scalar_lea.vmem %s0, %s499
        %p501 = pneg %p52
        %p502 = pneg %p49
        %p503 = pneg %p73
        %p504 = pneg %p70
        %p505 = pneg %p94
        %p506 = pneg %p91
        %p507 = pneg %p115
        %p508 = pneg %p112
        %p509 = pneg %p136
        %p510 = pneg %p133
        %p511 = pneg %p157
        %p512 = pneg %p154
        %p513 = pneg %p178
        %p514 = pneg %p175
        %p515 = pneg %p199
        %p516 = pneg %p196
        %p517 = pneg %p220
        %p518 = pneg %p217
        %p519 = pneg %p241
        %p520 = pneg %p238
        %p521 = pneg %p262
        %p522 = pneg %p259
        %p523 = pneg %p283
        %p524 = pneg %p280
        %p525 = pneg %p304
        %p526 = pneg %p301
        %p527 = pneg %p325
        %p528 = pneg %p322
        %p529 = pneg %p346
        %p530 = pneg %p343
        %p531 = pneg %p367
        %p532 = pneg %p364
        %p533 = pneg %p388
        %p534 = pneg %p385
        %p535 = pneg %p414
        %p536 = pneg %p411
        %s537 = sand.u32 %s401, 1
        %s538 = scalar_lea.sflag [#allocation3], %s537
        %s539 = sand.u32 %s401, 1
        %s540 = smul.addr %s539, 64
        %s541 = scalar_lea.vmem [#allocation2], %s540
        %p542 = scmp.lt.s32.totalorder %s31, 1
        %s543 = scalar_select %p542, %s31, 1
        %s544 = smul.addr %s543, 2
        %s545 = smul.addr %s544, 4
        %s546 = scalar_lea.vmem %s0, %s545
        %v548 = vld [vmem:[%s546] sm:$0xff]
        %v549 = vld [vmem:[%s1] sm:$0xf]
        %v550 = vld [vmem:[%s1 + $0x4] sm:$0xf]
        %v551 = vld [vmem:[%s1 + $0x8] sm:$0xf]
        %v552 = vld [vmem:[%s1 + $0xc] sm:$0xf]
        %v553 = vld [vmem:[%s1 + $0x10] sm:$0xf]
        %v554 = vld [vmem:[%s1 + $0x14] sm:$0xf]
        %v555 = vld [vmem:[%s1 + $0x18] sm:$0xf]
        %v556 = vld [vmem:[%s1 + $0x1c] sm:$0xf]
        %v557 = vld [vmem:[%s1 + $0x20] sm:$0xf]
        %v558 = vld [vmem:[%s1 + $0x24] sm:$0xf]
        %v559 = vld [vmem:[%s1 + $0x28] sm:$0xf]
        %v560 = vld [vmem:[%s1 + $0x2c] sm:$0xf]
        %v561 = vld [vmem:[%s1 + $0x30] sm:$0xf]
        %v562 = vld [vmem:[%s1 + $0x34] sm:$0xf]
        %v563 = vld [vmem:[%s1 + $0x38] sm:$0xf]
        %v564 = vld [vmem:[%s1 + $0x3c] sm:$0xf]
        %v565 = vld [vmem:[%s1 + $0x40] sm:$0xf]
        %v566 = vld [vmem:[%s1 + $0x44] sm:$0xf]
        %v567 = vld [vmem:[%s1 + $0x48] sm:$0xf]
        %v568 = vld [vmem:[%s1 + $0x4c] sm:$0xf]
        %v569 = vld [vmem:[%s1 + $0x50] sm:$0xf]
        %v570 = vld [vmem:[%s1 + $0x54] sm:$0xf]
        %v571 = vld [vmem:[%s1 + $0x58] sm:$0xf]
        %v572 = vld [vmem:[%s1 + $0x5c] sm:$0xf]
        %v573 = vld [vmem:[%s1 + $0x60] sm:$0xf]
        %v574 = vld [vmem:[%s1 + $0x64] sm:$0xf]
        %v575 = vld [vmem:[%s1 + $0x68] sm:$0xf]
        %v576 = vld [vmem:[%s1 + $0x6c] sm:$0xf]
        %v577 = vld [vmem:[%s1 + $0x70] sm:$0xf]
        %v578 = vld [vmem:[%s1 + $0x74] sm:$0xf]
        %v579 = vld [vmem:[%s1 + $0x78] sm:$0xf]
        %v580 = vld [vmem:[%s1 + $0x7c] sm:$0xf]
        %v582 = vunpack.c.l.b16 %v548
        %v583 = vunpack.c.h.b16 %v548
        %v584 = vpack.c.b16 %v582, %v582
        %v585 = vpack.c.b16 %v583, %v583
        %v620 = vunpack.c.l.b16 %v549
        %v621 = vunpack.c.l.b16 %v550
        %v622 = vunpack.c.l.b16 %v551
        %v623 = vunpack.c.l.b16 %v552
        %v624 = vunpack.c.l.b16 %v553
        %v625 = vunpack.c.l.b16 %v554
        %v626 = vunpack.c.l.b16 %v555
        %v627 = vunpack.c.l.b16 %v556
        %v628 = vunpack.c.l.b16 %v557
        %v629 = vunpack.c.l.b16 %v558
        %v630 = vunpack.c.l.b16 %v559
        %v631 = vunpack.c.l.b16 %v560
        %v632 = vunpack.c.l.b16 %v561
        %v633 = vunpack.c.l.b16 %v562
        %v634 = vunpack.c.l.b16 %v563
        %v635 = vunpack.c.l.b16 %v564
        %v636 = vunpack.c.l.b16 %v565
        %v637 = vunpack.c.l.b16 %v566
        %v638 = vunpack.c.l.b16 %v567
        %v639 = vunpack.c.l.b16 %v568
        %v640 = vunpack.c.l.b16 %v569
        %v641 = vunpack.c.l.b16 %v570
        %v642 = vunpack.c.l.b16 %v571
        %v643 = vunpack.c.l.b16 %v572
        %v644 = vunpack.c.l.b16 %v573
        %v645 = vunpack.c.l.b16 %v574
        %v646 = vunpack.c.l.b16 %v575
        %v647 = vunpack.c.l.b16 %v576
        %v648 = vunpack.c.l.b16 %v577
        %v649 = vunpack.c.l.b16 %v578
        %v650 = vunpack.c.l.b16 %v579
        %v651 = vunpack.c.l.b16 %v580
        %v652 = vpack.c.b16 %v621, %v620
        %v653 = vpack.c.b16 %v623, %v622
        %v654 = vpack.c.b16 %v625, %v624
        %v655 = vpack.c.b16 %v627, %v626
        %v656 = vpack.c.b16 %v629, %v628
        %v657 = vpack.c.b16 %v631, %v630
        %v658 = vpack.c.b16 %v633, %v632
        %v659 = vpack.c.b16 %v635, %v634
        %v660 = vpack.c.b16 %v637, %v636
        %v661 = vpack.c.b16 %v639, %v638
        %v662 = vpack.c.b16 %v641, %v640
        %v663 = vpack.c.b16 %v643, %v642
        %v664 = vpack.c.b16 %v645, %v644
        %v665 = vpack.c.b16 %v647, %v646
        %v666 = vpack.c.b16 %v649, %v648
        %v667 = vpack.c.b16 %v651, %v650
        %684 = vmatpush.bf16.msra.mxu0 %v659
        %685 = vmatpush.bf16.msra.mxu0 %v658
        %686 = vmatpush.bf16.msra.mxu0 %v657
        %687 = vmatpush.bf16.msra.mxu0 %v656
        %688 = vmatpush.bf16.msra.mxu0 %v655
        %689 = vmatpush.bf16.msra.mxu0 %v654
        %690 = vmatpush.bf16.msra.mxu0 %v653
        %691 = vmatpush.bf16.msra.mxu0 %v652
        %692 = vmatmul.bf16.gmra.mxu0 %v584
        %v693 = vpop.f32.mrf.mxu0
        %v694 = vadd.f32 0.0, %v693
        %v695 = vpop.f32.mrf.mxu0
        %696 = vdwg.mxu0
        %697 = vmatpush.bf16.msra.mxu0 %v667
        %698 = vmatpush.bf16.msra.mxu0 %v666
        %699 = vmatpush.bf16.msra.mxu0 %v665
        %700 = vmatpush.bf16.msra.mxu0 %v664
        %701 = vmatpush.bf16.msra.mxu0 %v663
        %702 = vmatpush.bf16.msra.mxu0 %v662
        %703 = vmatpush.bf16.msra.mxu0 %v661
        %704 = vmatpush.bf16.msra.mxu0 %v660
        %705 = vmatmul.bf16.gmra.mxu0 %v585
        %v706 = vpop.f32.mrf.mxu0
        %v707 = vadd.f32 %v694, %v706
        %v708 = vpop.f32.mrf.mxu0
        %709 = vdwg.mxu0
        %v710 = vld [vmem:[%s3] sm:$0xf]
        %v711 = vld [vmem:[%s3 + $0x4] sm:$0xf]
        %v712 = vpack.c.bf16 %v707, %v707
        %v713 = vld [vmem:[%s4] sm:$0xff]
        %v714 = vld [vmem:[%s4 + $0x8] sm:$0xff]
        %716 = vset.pattern.permute.xlu0 0
        %717 = vperm.xlu0 %716, %v713
        %v718 = vpop.permute.xlu0 %717
        %721 = vset.pattern.permute.xlu0 0
        %722 = vperm.xlu0 %721, %v714
        %v723 = vpop.permute.xlu0 %722
        %v727 = vunpack.c.l.b16 %v710
        %v728 = vunpack.c.l.b16 %v711
        %v729 = vpack.c.b16 %v728, %v727
        %vm730 = vcmask 64512
        %v732 = vsel %vm730, %v729, 0
        %vm734 = vcmask 1043456
        %v736 = vsel %vm734, %v712, 0
        %738 = vmatpush.bf16.msra.mxu0 0
        %739 = vmatpush.bf16.msra.mxu0 0
        %740 = vmatpush.bf16.msra.mxu0 0
        %741 = vmatpush.bf16.msra.mxu0 0
        %742 = vmatpush.bf16.msra.mxu0 0
        %743 = vmatpush.bf16.msra.mxu0 0
        %744 = vmatpush.bf16.msra.mxu0 0
        %745 = vmatpush.bf16.msra.mxu0 %v736
        %746 = vmatmul.bf16.gmra.mxu0 %v732
        %v747 = vpop.f32.mrf.mxu0
        %v748 = vadd.f32 %v718, %v747
        %v749 = vpop.f32.mrf.mxu0
        %v750 = vadd.f32 %v723, %v749
        %751 = vdwg.mxu0
        %vm752 = vcmp.gt.f32.partialorder %v748, 0.0
        %vm753 = vcmp.gt.f32.partialorder %v750, 0.0
        %v754 = vmul.f32 %v748, 0.01
        %v755 = vmul.f32 %v750, 0.01
        %v756 = vsel %vm752, %v748, %v754
        %v757 = vsel %vm753, %v750, %v755
        %v758 = vpack.c.bf16 %v757, %v756
        %v759 = vld [vmem:[%s2] sm:$0xff]
        %v761 = vunpack.c.l.b16 %v759
        %v762 = vunpack.c.h.b16 %v759
        %v763 = vpack.c.b16 %v761, %v761
        %v764 = vpack.c.b16 %v762, %v762
        %v766 = vsel %vm730, %v758, 0
        %v769 = vsel %vm734, %v763, 0
        %v772 = vsel %vm734, %v764, 0
        %774 = vmatpush.bf16.msra.mxu0 0
        %775 = vmatpush.bf16.msra.mxu0 0
        %776 = vmatpush.bf16.msra.mxu0 0
        %777 = vmatpush.bf16.msra.mxu0 0
        %778 = vmatpush.bf16.msra.mxu0 0
        %779 = vmatpush.bf16.msra.mxu0 0
        %780 = vmatpush.bf16.msra.mxu0 0
        %781 = vmatpush.bf16.msra.mxu0 %v769
        %782 = vmatmul.bf16.gmra.mxu0 %v766
        %v783 = vpop.f32.mrf.mxu0
        %v784 = vadd.f32 0.0, %v783
        %v785 = vpop.f32.mrf.mxu0
        %v786 = vadd.f32 0.0, %v785
        %787 = vdwg.mxu0
        %788 = vmatpush.bf16.msra.mxu0 0
        %789 = vmatpush.bf16.msra.mxu0 0
        %790 = vmatpush.bf16.msra.mxu0 0
        %791 = vmatpush.bf16.msra.mxu0 0
        %792 = vmatpush.bf16.msra.mxu0 0
        %793 = vmatpush.bf16.msra.mxu0 0
        %794 = vmatpush.bf16.msra.mxu0 0
        %795 = vmatpush.bf16.msra.mxu0 %v772
        %796 = vmatmul.bf16.gmra.mxu0 %v766
        %v797 = vpop.f32.mrf.mxu0
        %v798 = vadd.f32 0.0, %v797
        %v799 = vpop.f32.mrf.mxu0
        %v800 = vadd.f32 0.0, %v799
        %801 = vdwg.mxu0
        %v802 = vpack.c.bf16 %v798, %v784
        %v803 = vpack.c.bf16 %v800, %v786
        %804 = vst [vmem:[%s541] sm:$0xff] %v802
        %805 = vst [vmem:[%s541 + $0x8] sm:$0xff] %v803
        %v806 = vld [vmem:[%s5] sm:$0xf]
        %v807 = vld [vmem:[%s5 + $0x4] sm:$0xf]
        %v808 = vld [vmem:[%s5 + $0x8] sm:$0xf]
        %v809 = vld [vmem:[%s5 + $0xc] sm:$0xf]
        %v810 = vld [vmem:[%s5 + $0x10] sm:$0xf]
        %v811 = vld [vmem:[%s5 + $0x14] sm:$0xf]
        %v812 = vld [vmem:[%s5 + $0x18] sm:$0xf]
        %v813 = vld [vmem:[%s5 + $0x1c] sm:$0xf]
        %v814 = vld [vmem:[%s5 + $0x20] sm:$0xf]
        %v815 = vld [vmem:[%s5 + $0x24] sm:$0xf]
        %v816 = vld [vmem:[%s5 + $0x28] sm:$0xf]
        %v817 = vld [vmem:[%s5 + $0x2c] sm:$0xf]
        %v818 = vld [vmem:[%s5 + $0x30] sm:$0xf]
        %v819 = vld [vmem:[%s5 + $0x34] sm:$0xf]
        %v820 = vld [vmem:[%s5 + $0x38] sm:$0xf]
        %v821 = vld [vmem:[%s5 + $0x3c] sm:$0xf]
        %v822 = vld [vmem:[%s5 + $0x40] sm:$0xf]
        %v823 = vld [vmem:[%s5 + $0x44] sm:$0xf]
        %v824 = vld [vmem:[%s5 + $0x48] sm:$0xf]
        %v825 = vld [vmem:[%s5 + $0x4c] sm:$0xf]
        %v826 = vld [vmem:[%s5 + $0x50] sm:$0xf]
        %v827 = vld [vmem:[%s5 + $0x54] sm:$0xf]
        %v828 = vld [vmem:[%s5 + $0x58] sm:$0xf]
        %v829 = vld [vmem:[%s5 + $0x5c] sm:$0xf]
        %v830 = vld [vmem:[%s5 + $0x60] sm:$0xf]
        %v831 = vld [vmem:[%s5 + $0x64] sm:$0xf]
        %v832 = vld [vmem:[%s5 + $0x68] sm:$0xf]
        %v833 = vld [vmem:[%s5 + $0x6c] sm:$0xf]
        %v834 = vld [vmem:[%s5 + $0x70] sm:$0xf]
        %v835 = vld [vmem:[%s5 + $0x74] sm:$0xf]
        %v836 = vld [vmem:[%s5 + $0x78] sm:$0xf]
        %v837 = vld [vmem:[%s5 + $0x7c] sm:$0xf]
        %v870 = vunpack.c.l.b16 %v806
        %v871 = vunpack.c.l.b16 %v807
        %v872 = vunpack.c.l.b16 %v808
        %v873 = vunpack.c.l.b16 %v809
        %v874 = vunpack.c.l.b16 %v810
        %v875 = vunpack.c.l.b16 %v811
        %v876 = vunpack.c.l.b16 %v812
        %v877 = vunpack.c.l.b16 %v813
        %v878 = vunpack.c.l.b16 %v814
        %v879 = vunpack.c.l.b16 %v815
        %v880 = vunpack.c.l.b16 %v816
        %v881 = vunpack.c.l.b16 %v817
        %v882 = vunpack.c.l.b16 %v818
        %v883 = vunpack.c.l.b16 %v819
        %v884 = vunpack.c.l.b16 %v820
        %v885 = vunpack.c.l.b16 %v821
        %v886 = vunpack.c.l.b16 %v822
        %v887 = vunpack.c.l.b16 %v823
        %v888 = vunpack.c.l.b16 %v824
        %v889 = vunpack.c.l.b16 %v825
        %v890 = vunpack.c.l.b16 %v826
        %v891 = vunpack.c.l.b16 %v827
        %v892 = vunpack.c.l.b16 %v828
        %v893 = vunpack.c.l.b16 %v829
        %v894 = vunpack.c.l.b16 %v830
        %v895 = vunpack.c.l.b16 %v831
        %v896 = vunpack.c.l.b16 %v832
        %v897 = vunpack.c.l.b16 %v833
        %v898 = vunpack.c.l.b16 %v834
        %v899 = vunpack.c.l.b16 %v835
        %v900 = vunpack.c.l.b16 %v836
        %v901 = vunpack.c.l.b16 %v837
        %v902 = vpack.c.b16 %v871, %v870
        %v903 = vpack.c.b16 %v873, %v872
        %v904 = vpack.c.b16 %v875, %v874
        %v905 = vpack.c.b16 %v877, %v876
        %v906 = vpack.c.b16 %v879, %v878
        %v907 = vpack.c.b16 %v881, %v880
        %v908 = vpack.c.b16 %v883, %v882
        %v909 = vpack.c.b16 %v885, %v884
        %v910 = vpack.c.b16 %v887, %v886
        %v911 = vpack.c.b16 %v889, %v888
        %v912 = vpack.c.b16 %v891, %v890
        %v913 = vpack.c.b16 %v893, %v892
        %v914 = vpack.c.b16 %v895, %v894
        %v915 = vpack.c.b16 %v897, %v896
        %v916 = vpack.c.b16 %v899, %v898
        %v917 = vpack.c.b16 %v901, %v900
        %934 = vmatpush.bf16.msra.mxu0 %v909
        %935 = vmatpush.bf16.msra.mxu0 %v908
        %936 = vmatpush.bf16.msra.mxu0 %v907
        %937 = vmatpush.bf16.msra.mxu0 %v906
        %938 = vmatpush.bf16.msra.mxu0 %v905
        %939 = vmatpush.bf16.msra.mxu0 %v904
        %940 = vmatpush.bf16.msra.mxu0 %v903
        %941 = vmatpush.bf16.msra.mxu0 %v902
        %942 = vmatmul.bf16.gmra.mxu0 %v584
        %v943 = vpop.f32.mrf.mxu0
        %v944 = vadd.f32 0.0, %v943
        %v945 = vpop.f32.mrf.mxu0
        %946 = vdwg.mxu0
        %947 = vmatpush.bf16.msra.mxu0 %v917
        %948 = vmatpush.bf16.msra.mxu0 %v916
        %949 = vmatpush.bf16.msra.mxu0 %v915
        %950 = vmatpush.bf16.msra.mxu0 %v914
        %951 = vmatpush.bf16.msra.mxu0 %v913
        %952 = vmatpush.bf16.msra.mxu0 %v912
        %953 = vmatpush.bf16.msra.mxu0 %v911
        %954 = vmatpush.bf16.msra.mxu0 %v910
        %955 = vmatmul.bf16.gmra.mxu0 %v585
        %v956 = vpop.f32.mrf.mxu0
        %v957 = vadd.f32 %v944, %v956
        %v958 = vpop.f32.mrf.mxu0
        %959 = vdwg.mxu0
        %v960 = vld [vmem:[%s7] sm:$0xf]
        %v961 = vld [vmem:[%s7 + $0x4] sm:$0xf]
        %v962 = vpack.c.bf16 %v957, %v957
        %v963 = vld [vmem:[%s8] sm:$0xff]
        %v964 = vld [vmem:[%s8 + $0x8] sm:$0xff]
        %966 = vset.pattern.permute.xlu0 0
        %967 = vperm.xlu0 %966, %v963
        %v968 = vpop.permute.xlu0 %967
        %971 = vset.pattern.permute.xlu0 0
        %972 = vperm.xlu0 %971, %v964
        %v973 = vpop.permute.xlu0 %972
        %v977 = vunpack.c.l.b16 %v960
        %v978 = vunpack.c.l.b16 %v961
        %v979 = vpack.c.b16 %v978, %v977
        %v981 = vsel %vm730, %v979, 0
        %v984 = vsel %vm734, %v962, 0
        %986 = vmatpush.bf16.msra.mxu0 0
        %987 = vmatpush.bf16.msra.mxu0 0
        %988 = vmatpush.bf16.msra.mxu0 0
        %989 = vmatpush.bf16.msra.mxu0 0
        %990 = vmatpush.bf16.msra.mxu0 0
        %991 = vmatpush.bf16.msra.mxu0 0
        %992 = vmatpush.bf16.msra.mxu0 0
        %993 = vmatpush.bf16.msra.mxu0 %v984
        %994 = vmatmul.bf16.gmra.mxu0 %v981
        %v995 = vpop.f32.mrf.mxu0
        %v996 = vadd.f32 %v968, %v995
        %v997 = vpop.f32.mrf.mxu0
        %v998 = vadd.f32 %v973, %v997
        %999 = vdwg.mxu0
        %vm1000 = vcmp.gt.f32.partialorder %v996, 0.0
        %vm1001 = vcmp.gt.f32.partialorder %v998, 0.0
        %v1002 = vmul.f32 %v996, 0.01
        %v1003 = vmul.f32 %v998, 0.01
        %v1004 = vsel %vm1000, %v996, %v1002
        %v1005 = vsel %vm1001, %v998, %v1003
        %v1006 = vpack.c.bf16 %v1005, %v1004
        %v1007 = vld [vmem:[%s6] sm:$0xff]
        %v1009 = vunpack.c.l.b16 %v1007
        %v1010 = vunpack.c.h.b16 %v1007
        %v1011 = vpack.c.b16 %v1009, %v1009
        %v1012 = vpack.c.b16 %v1010, %v1010
        %v1014 = vsel %vm730, %v1006, 0
        %v1017 = vsel %vm734, %v1011, 0
        %v1020 = vsel %vm734, %v1012, 0
        %1022 = vmatpush.bf16.msra.mxu0 0
        %1023 = vmatpush.bf16.msra.mxu0 0
        %1024 = vmatpush.bf16.msra.mxu0 0
        %1025 = vmatpush.bf16.msra.mxu0 0
        %1026 = vmatpush.bf16.msra.mxu0 0
        %1027 = vmatpush.bf16.msra.mxu0 0
        %1028 = vmatpush.bf16.msra.mxu0 0
        %1029 = vmatpush.bf16.msra.mxu0 %v1017
        %1030 = vmatmul.bf16.gmra.mxu0 %v1014
        %v1031 = vpop.f32.mrf.mxu0
        %v1032 = vadd.f32 0.0, %v1031
        %v1033 = vpop.f32.mrf.mxu0
        %v1034 = vadd.f32 0.0, %v1033
        %1035 = vdwg.mxu0
        %1036 = vmatpush.bf16.msra.mxu0 0
        %1037 = vmatpush.bf16.msra.mxu0 0
        %1038 = vmatpush.bf16.msra.mxu0 0
        %1039 = vmatpush.bf16.msra.mxu0 0
        %1040 = vmatpush.bf16.msra.mxu0 0
        %1041 = vmatpush.bf16.msra.mxu0 0
        %1042 = vmatpush.bf16.msra.mxu0 0
        %1043 = vmatpush.bf16.msra.mxu0 %v1020
        %1044 = vmatmul.bf16.gmra.mxu0 %v1014
        %v1045 = vpop.f32.mrf.mxu0
        %v1046 = vadd.f32 0.0, %v1045
        %v1047 = vpop.f32.mrf.mxu0
        %v1048 = vadd.f32 0.0, %v1047
        %1049 = vdwg.mxu0
        %v1050 = vpack.c.bf16 %v1046, %v1032
        %v1051 = vpack.c.bf16 %v1048, %v1034
        %1052 = vst [vmem:[%s541 + $0x10] sm:$0xff] %v1050
        %1053 = vst [vmem:[%s541 + $0x18] sm:$0xff] %v1051
        %v1054 = vld [vmem:[%s9] sm:$0xf]
        %v1055 = vld [vmem:[%s9 + $0x4] sm:$0xf]
        %v1056 = vld [vmem:[%s9 + $0x8] sm:$0xf]
        %v1057 = vld [vmem:[%s9 + $0xc] sm:$0xf]
        %v1058 = vld [vmem:[%s9 + $0x10] sm:$0xf]
        %v1059 = vld [vmem:[%s9 + $0x14] sm:$0xf]
        %v1060 = vld [vmem:[%s9 + $0x18] sm:$0xf]
        %v1061 = vld [vmem:[%s9 + $0x1c] sm:$0xf]
        %v1062 = vld [vmem:[%s9 + $0x20] sm:$0xf]
        %v1063 = vld [vmem:[%s9 + $0x24] sm:$0xf]
        %v1064 = vld [vmem:[%s9 + $0x28] sm:$0xf]
        %v1065 = vld [vmem:[%s9 + $0x2c] sm:$0xf]
        %v1066 = vld [vmem:[%s9 + $0x30] sm:$0xf]
        %v1067 = vld [vmem:[%s9 + $0x34] sm:$0xf]
        %v1068 = vld [vmem:[%s9 + $0x38] sm:$0xf]
        %v1069 = vld [vmem:[%s9 + $0x3c] sm:$0xf]
        %v1070 = vld [vmem:[%s9 + $0x40] sm:$0xf]
        %v1071 = vld [vmem:[%s9 + $0x44] sm:$0xf]
        %v1072 = vld [vmem:[%s9 + $0x48] sm:$0xf]
        %v1073 = vld [vmem:[%s9 + $0x4c] sm:$0xf]
        %v1074 = vld [vmem:[%s9 + $0x50] sm:$0xf]
        %v1075 = vld [vmem:[%s9 + $0x54] sm:$0xf]
        %v1076 = vld [vmem:[%s9 + $0x58] sm:$0xf]
        %v1077 = vld [vmem:[%s9 + $0x5c] sm:$0xf]
        %v1078 = vld [vmem:[%s9 + $0x60] sm:$0xf]
        %v1079 = vld [vmem:[%s9 + $0x64] sm:$0xf]
        %v1080 = vld [vmem:[%s9 + $0x68] sm:$0xf]
        %v1081 = vld [vmem:[%s9 + $0x6c] sm:$0xf]
        %v1082 = vld [vmem:[%s9 + $0x70] sm:$0xf]
        %v1083 = vld [vmem:[%s9 + $0x74] sm:$0xf]
        %v1084 = vld [vmem:[%s9 + $0x78] sm:$0xf]
        %v1085 = vld [vmem:[%s9 + $0x7c] sm:$0xf]
        %v1118 = vunpack.c.l.b16 %v1054
        %v1119 = vunpack.c.l.b16 %v1055
        %v1120 = vunpack.c.l.b16 %v1056
        %v1121 = vunpack.c.l.b16 %v1057
        %v1122 = vunpack.c.l.b16 %v1058
        %v1123 = vunpack.c.l.b16 %v1059
        %v1124 = vunpack.c.l.b16 %v1060
        %v1125 = vunpack.c.l.b16 %v1061
        %v1126 = vunpack.c.l.b16 %v1062
        %v1127 = vunpack.c.l.b16 %v1063
        %v1128 = vunpack.c.l.b16 %v1064
        %v1129 = vunpack.c.l.b16 %v1065
        %v1130 = vunpack.c.l.b16 %v1066
        %v1131 = vunpack.c.l.b16 %v1067
        %v1132 = vunpack.c.l.b16 %v1068
        %v1133 = vunpack.c.l.b16 %v1069
        %v1134 = vunpack.c.l.b16 %v1070
        %v1135 = vunpack.c.l.b16 %v1071
        %v1136 = vunpack.c.l.b16 %v1072
        %v1137 = vunpack.c.l.b16 %v1073
        %v1138 = vunpack.c.l.b16 %v1074
        %v1139 = vunpack.c.l.b16 %v1075
        %v1140 = vunpack.c.l.b16 %v1076
        %v1141 = vunpack.c.l.b16 %v1077
        %v1142 = vunpack.c.l.b16 %v1078
        %v1143 = vunpack.c.l.b16 %v1079
        %v1144 = vunpack.c.l.b16 %v1080
        %v1145 = vunpack.c.l.b16 %v1081
        %v1146 = vunpack.c.l.b16 %v1082
        %v1147 = vunpack.c.l.b16 %v1083
        %v1148 = vunpack.c.l.b16 %v1084
        %v1149 = vunpack.c.l.b16 %v1085
        %v1150 = vpack.c.b16 %v1119, %v1118
        %v1151 = vpack.c.b16 %v1121, %v1120
        %v1152 = vpack.c.b16 %v1123, %v1122
        %v1153 = vpack.c.b16 %v1125, %v1124
        %v1154 = vpack.c.b16 %v1127, %v1126
        %v1155 = vpack.c.b16 %v1129, %v1128
        %v1156 = vpack.c.b16 %v1131, %v1130
        %v1157 = vpack.c.b16 %v1133, %v1132
        %v1158 = vpack.c.b16 %v1135, %v1134
        %v1159 = vpack.c.b16 %v1137, %v1136
        %v1160 = vpack.c.b16 %v1139, %v1138
        %v1161 = vpack.c.b16 %v1141, %v1140
        %v1162 = vpack.c.b16 %v1143, %v1142
        %v1163 = vpack.c.b16 %v1145, %v1144
        %v1164 = vpack.c.b16 %v1147, %v1146
        %v1165 = vpack.c.b16 %v1149, %v1148
        %1182 = vmatpush.bf16.msra.mxu0 %v1157
        %1183 = vmatpush.bf16.msra.mxu0 %v1156
        %1184 = vmatpush.bf16.msra.mxu0 %v1155
        %1185 = vmatpush.bf16.msra.mxu0 %v1154
        %1186 = vmatpush.bf16.msra.mxu0 %v1153
        %1187 = vmatpush.bf16.msra.mxu0 %v1152
        %1188 = vmatpush.bf16.msra.mxu0 %v1151
        %1189 = vmatpush.bf16.msra.mxu0 %v1150
        %1190 = vmatmul.bf16.gmra.mxu0 %v584
        %v1191 = vpop.f32.mrf.mxu0
        %v1192 = vadd.f32 0.0, %v1191
        %v1193 = vpop.f32.mrf.mxu0
        %1194 = vdwg.mxu0
        %1195 = vmatpush.bf16.msra.mxu0 %v1165
        %1196 = vmatpush.bf16.msra.mxu0 %v1164
        %1197 = vmatpush.bf16.msra.mxu0 %v1163
        %1198 = vmatpush.bf16.msra.mxu0 %v1162
        %1199 = vmatpush.bf16.msra.mxu0 %v1161
        %1200 = vmatpush.bf16.msra.mxu0 %v1160
        %1201 = vmatpush.bf16.msra.mxu0 %v1159
        %1202 = vmatpush.bf16.msra.mxu0 %v1158
        %1203 = vmatmul.bf16.gmra.mxu0 %v585
        %v1204 = vpop.f32.mrf.mxu0
        %v1205 = vadd.f32 %v1192, %v1204
        %v1206 = vpop.f32.mrf.mxu0
        %1207 = vdwg.mxu0
        %v1208 = vld [vmem:[%s11] sm:$0xf]
        %v1209 = vld [vmem:[%s11 + $0x4] sm:$0xf]
        %v1210 = vpack.c.bf16 %v1205, %v1205
        %v1211 = vld [vmem:[%s12] sm:$0xff]
        %v1212 = vld [vmem:[%s12 + $0x8] sm:$0xff]
        %1214 = vset.pattern.permute.xlu0 0
        %1215 = vperm.xlu0 %1214, %v1211
        %v1216 = vpop.permute.xlu0 %1215
        %1219 = vset.pattern.permute.xlu0 0
        %1220 = vperm.xlu0 %1219, %v1212
        %v1221 = vpop.permute.xlu0 %1220
        %v1225 = vunpack.c.l.b16 %v1208
        %v1226 = vunpack.c.l.b16 %v1209
        %v1227 = vpack.c.b16 %v1226, %v1225
        %v1229 = vsel %vm730, %v1227, 0
        %v1232 = vsel %vm734, %v1210, 0
        %1234 = vmatpush.bf16.msra.mxu0 0
        %1235 = vmatpush.bf16.msra.mxu0 0
        %1236 = vmatpush.bf16.msra.mxu0 0
        %1237 = vmatpush.bf16.msra.mxu0 0
        %1238 = vmatpush.bf16.msra.mxu0 0
        %1239 = vmatpush.bf16.msra.mxu0 0
        %1240 = vmatpush.bf16.msra.mxu0 0
        %1241 = vmatpush.bf16.msra.mxu0 %v1232
        %1242 = vmatmul.bf16.gmra.mxu0 %v1229
        %v1243 = vpop.f32.mrf.mxu0
        %v1244 = vadd.f32 %v1216, %v1243
        %v1245 = vpop.f32.mrf.mxu0
        %v1246 = vadd.f32 %v1221, %v1245
        %1247 = vdwg.mxu0
        %vm1248 = vcmp.gt.f32.partialorder %v1244, 0.0
        %vm1249 = vcmp.gt.f32.partialorder %v1246, 0.0
        %v1250 = vmul.f32 %v1244, 0.01
        %v1251 = vmul.f32 %v1246, 0.01
        %v1252 = vsel %vm1248, %v1244, %v1250
        %v1253 = vsel %vm1249, %v1246, %v1251
        %v1254 = vpack.c.bf16 %v1253, %v1252
        %v1255 = vld [vmem:[%s10] sm:$0xff]
        %v1256 = vld [vmem:[%s10 + $0x8] sm:$0x11]
        %v1259 = vunpack.c.l.b16 %v1255
        %v1260 = vunpack.c.h.b16 %v1255
        %v1261 = vunpack.c.l.b16 %v1256
        %v1262 = vunpack.c.h.b16 %v1256
        %v1263 = vpack.c.b16 %v1261, %v1259
        %v1264 = vpack.c.b16 %v1262, %v1260
        %vm1265 = vcmask 72704
        %v1267 = vsel %vm1265, %v1254, 0
        %vm1269 = vcmask 1044480
        %v1270 = vsel %vm734, 4294967295, 65535
        %v1271 = vsel %vm1269, %v1270, 0
        %v1273 = vand.u32 %v1263, %v1271
        %v1276 = vand.u32 %v1264, %v1271
        %1278 = vmatpush.bf16.msra.mxu0 0
        %1279 = vmatpush.bf16.msra.mxu0 0
        %1280 = vmatpush.bf16.msra.mxu0 0
        %1281 = vmatpush.bf16.msra.mxu0 0
        %1282 = vmatpush.bf16.msra.mxu0 0
        %1283 = vmatpush.bf16.msra.mxu0 0
        %1284 = vmatpush.bf16.msra.mxu0 0
        %1285 = vmatpush.bf16.msra.mxu0 %v1273
        %1286 = vmatmul.bf16.gmra.mxu0 %v1267
        %v1287 = vpop.f32.mrf.mxu0
        %v1288 = vadd.f32 0.0, %v1287
        %v1289 = vpop.f32.mrf.mxu0
        %v1290 = vadd.f32 0.0, %v1289
        %1291 = vdwg.mxu0
        %1292 = vmatpush.bf16.msra.mxu0 0
        %1293 = vmatpush.bf16.msra.mxu0 0
        %1294 = vmatpush.bf16.msra.mxu0 0
        %1295 = vmatpush.bf16.msra.mxu0 0
        %1296 = vmatpush.bf16.msra.mxu0 0
        %1297 = vmatpush.bf16.msra.mxu0 0
        %1298 = vmatpush.bf16.msra.mxu0 0
        %1299 = vmatpush.bf16.msra.mxu0 %v1276
        %1300 = vmatmul.bf16.gmra.mxu0 %v1267
        %v1301 = vpop.f32.mrf.mxu0
        %v1302 = vadd.f32 0.0, %v1301
        %v1303 = vpop.f32.mrf.mxu0
        %v1304 = vadd.f32 0.0, %v1303
        %1305 = vdwg.mxu0
        %v1306 = vpack.c.bf16 %v1302, %v1288
        %v1307 = vpack.c.bf16 %v1304, %v1290
        %1308 = vst [vmem:[%s541 + $0x20] sm:$0xff] %v1306
        %1309 = vst [vmem:[%s541 + $0x28] sm:$0xff] %v1307
        %v1310 = vld [vmem:[%s13] sm:$0xf]
        %v1311 = vld [vmem:[%s13 + $0x4] sm:$0xf]
        %v1312 = vld [vmem:[%s13 + $0x8] sm:$0xf]
        %v1313 = vld [vmem:[%s13 + $0xc] sm:$0xf]
        %v1314 = vld [vmem:[%s13 + $0x10] sm:$0xf]
        %v1315 = vld [vmem:[%s13 + $0x14] sm:$0xf]
        %v1316 = vld [vmem:[%s13 + $0x18] sm:$0xf]
        %v1317 = vld [vmem:[%s13 + $0x1c] sm:$0xf]
        %v1318 = vld [vmem:[%s13 + $0x20] sm:$0xf]
        %v1319 = vld [vmem:[%s13 + $0x24] sm:$0xf]
        %v1320 = vld [vmem:[%s13 + $0x28] sm:$0xf]
        %v1321 = vld [vmem:[%s13 + $0x2c] sm:$0xf]
        %v1322 = vld [vmem:[%s13 + $0x30] sm:$0xf]
        %v1323 = vld [vmem:[%s13 + $0x34] sm:$0xf]
        %v1324 = vld [vmem:[%s13 + $0x38] sm:$0xf]
        %v1325 = vld [vmem:[%s13 + $0x3c] sm:$0xf]
        %v1326 = vld [vmem:[%s13 + $0x40] sm:$0xf]
        %v1327 = vld [vmem:[%s13 + $0x44] sm:$0xf]
        %v1328 = vld [vmem:[%s13 + $0x48] sm:$0xf]
        %v1329 = vld [vmem:[%s13 + $0x4c] sm:$0xf]
        %v1330 = vld [vmem:[%s13 + $0x50] sm:$0xf]
        %v1331 = vld [vmem:[%s13 + $0x54] sm:$0xf]
        %v1332 = vld [vmem:[%s13 + $0x58] sm:$0xf]
        %v1333 = vld [vmem:[%s13 + $0x5c] sm:$0xf]
        %v1334 = vld [vmem:[%s13 + $0x60] sm:$0xf]
        %v1335 = vld [vmem:[%s13 + $0x64] sm:$0xf]
        %v1336 = vld [vmem:[%s13 + $0x68] sm:$0xf]
        %v1337 = vld [vmem:[%s13 + $0x6c] sm:$0xf]
        %v1338 = vld [vmem:[%s13 + $0x70] sm:$0xf]
        %v1339 = vld [vmem:[%s13 + $0x74] sm:$0xf]
        %v1340 = vld [vmem:[%s13 + $0x78] sm:$0xf]
        %v1341 = vld [vmem:[%s13 + $0x7c] sm:$0xf]
        %v1374 = vunpack.c.l.b16 %v1310
        %v1375 = vunpack.c.l.b16 %v1311
        %v1376 = vunpack.c.l.b16 %v1312
        %v1377 = vunpack.c.l.b16 %v1313
        %v1378 = vunpack.c.l.b16 %v1314
        %v1379 = vunpack.c.l.b16 %v1315
        %v1380 = vunpack.c.l.b16 %v1316
        %v1381 = vunpack.c.l.b16 %v1317
        %v1382 = vunpack.c.l.b16 %v1318
        %v1383 = vunpack.c.l.b16 %v1319
        %v1384 = vunpack.c.l.b16 %v1320
        %v1385 = vunpack.c.l.b16 %v1321
        %v1386 = vunpack.c.l.b16 %v1322
        %v1387 = vunpack.c.l.b16 %v1323
        %v1388 = vunpack.c.l.b16 %v1324
        %v1389 = vunpack.c.l.b16 %v1325
        %v1390 = vunpack.c.l.b16 %v1326
        %v1391 = vunpack.c.l.b16 %v1327
        %v1392 = vunpack.c.l.b16 %v1328
        %v1393 = vunpack.c.l.b16 %v1329
        %v1394 = vunpack.c.l.b16 %v1330
        %v1395 = vunpack.c.l.b16 %v1331
        %v1396 = vunpack.c.l.b16 %v1332
        %v1397 = vunpack.c.l.b16 %v1333
        %v1398 = vunpack.c.l.b16 %v1334
        %v1399 = vunpack.c.l.b16 %v1335
        %v1400 = vunpack.c.l.b16 %v1336
        %v1401 = vunpack.c.l.b16 %v1337
        %v1402 = vunpack.c.l.b16 %v1338
        %v1403 = vunpack.c.l.b16 %v1339
        %v1404 = vunpack.c.l.b16 %v1340
        %v1405 = vunpack.c.l.b16 %v1341
        %v1406 = vpack.c.b16 %v1375, %v1374
        %v1407 = vpack.c.b16 %v1377, %v1376
        %v1408 = vpack.c.b16 %v1379, %v1378
        %v1409 = vpack.c.b16 %v1381, %v1380
        %v1410 = vpack.c.b16 %v1383, %v1382
        %v1411 = vpack.c.b16 %v1385, %v1384
        %v1412 = vpack.c.b16 %v1387, %v1386
        %v1413 = vpack.c.b16 %v1389, %v1388
        %v1414 = vpack.c.b16 %v1391, %v1390
        %v1415 = vpack.c.b16 %v1393, %v1392
        %v1416 = vpack.c.b16 %v1395, %v1394
        %v1417 = vpack.c.b16 %v1397, %v1396
        %v1418 = vpack.c.b16 %v1399, %v1398
        %v1419 = vpack.c.b16 %v1401, %v1400
        %v1420 = vpack.c.b16 %v1403, %v1402
        %v1421 = vpack.c.b16 %v1405, %v1404
        %1438 = vmatpush.bf16.msra.mxu0 %v1413
        %1439 = vmatpush.bf16.msra.mxu0 %v1412
        %1440 = vmatpush.bf16.msra.mxu0 %v1411
        %1441 = vmatpush.bf16.msra.mxu0 %v1410
        %1442 = vmatpush.bf16.msra.mxu0 %v1409
        %1443 = vmatpush.bf16.msra.mxu0 %v1408
        %1444 = vmatpush.bf16.msra.mxu0 %v1407
        %1445 = vmatpush.bf16.msra.mxu0 %v1406
        %1446 = vmatmul.bf16.gmra.mxu0 %v584
        %v1447 = vpop.f32.mrf.mxu0
        %v1448 = vadd.f32 0.0, %v1447
        %v1449 = vpop.f32.mrf.mxu0
        %1450 = vdwg.mxu0
        %1451 = vmatpush.bf16.msra.mxu0 %v1421
        %1452 = vmatpush.bf16.msra.mxu0 %v1420
        %1453 = vmatpush.bf16.msra.mxu0 %v1419
        %1454 = vmatpush.bf16.msra.mxu0 %v1418
        %1455 = vmatpush.bf16.msra.mxu0 %v1417
        %1456 = vmatpush.bf16.msra.mxu0 %v1416
        %1457 = vmatpush.bf16.msra.mxu0 %v1415
        %1458 = vmatpush.bf16.msra.mxu0 %v1414
        %1459 = vmatmul.bf16.gmra.mxu0 %v585
        %v1460 = vpop.f32.mrf.mxu0
        %v1461 = vadd.f32 %v1448, %v1460
        %v1462 = vpop.f32.mrf.mxu0
        %1463 = vdwg.mxu0
        %v1464 = vld [vmem:[%s15] sm:$0xf]
        %v1465 = vld [vmem:[%s15 + $0x4] sm:$0xf]
        %v1466 = vpack.c.bf16 %v1461, %v1461
        %v1467 = vld [vmem:[%s16] sm:$0xff]
        %v1468 = vld [vmem:[%s16 + $0x8] sm:$0xff]
        %1470 = vset.pattern.permute.xlu0 0
        %1471 = vperm.xlu0 %1470, %v1467
        %v1472 = vpop.permute.xlu0 %1471
        %1475 = vset.pattern.permute.xlu0 0
        %1476 = vperm.xlu0 %1475, %v1468
        %v1477 = vpop.permute.xlu0 %1476
        %v1481 = vunpack.c.l.b16 %v1464
        %v1482 = vunpack.c.l.b16 %v1465
        %v1483 = vpack.c.b16 %v1482, %v1481
        %v1485 = vsel %vm730, %v1483, 0
        %v1488 = vsel %vm734, %v1466, 0
        %1490 = vmatpush.bf16.msra.mxu0 0
        %1491 = vmatpush.bf16.msra.mxu0 0
        %1492 = vmatpush.bf16.msra.mxu0 0
        %1493 = vmatpush.bf16.msra.mxu0 0
        %1494 = vmatpush.bf16.msra.mxu0 0
        %1495 = vmatpush.bf16.msra.mxu0 0
        %1496 = vmatpush.bf16.msra.mxu0 0
        %1497 = vmatpush.bf16.msra.mxu0 %v1488
        %1498 = vmatmul.bf16.gmra.mxu0 %v1485
        %v1499 = vpop.f32.mrf.mxu0
        %v1500 = vadd.f32 %v1472, %v1499
        %v1501 = vpop.f32.mrf.mxu0
        %v1502 = vadd.f32 %v1477, %v1501
        %1503 = vdwg.mxu0
        %vm1504 = vcmp.gt.f32.partialorder %v1500, 0.0
        %vm1505 = vcmp.gt.f32.partialorder %v1502, 0.0
        %v1506 = vmul.f32 %v1500, 0.01
        %v1507 = vmul.f32 %v1502, 0.01
        %v1508 = vsel %vm1504, %v1500, %v1506
        %v1509 = vsel %vm1505, %v1502, %v1507
        %v1510 = vpack.c.bf16 %v1509, %v1508
        %v1511 = vld [vmem:[%s14] sm:$0xff]
        %v1512 = vld [vmem:[%s14 + $0x8] sm:$0xff]
        %v1513 = vld [vmem:[%s14 + $0x10] sm:$0xff]
        %v1514 = vld [vmem:[%s14 + $0x18] sm:$0xff]
        %v1515 = vld [vmem:[%s14 + $0x20] sm:$0x33]
        %v1521 = vunpack.c.l.b16 %v1511
        %v1522 = vunpack.c.h.b16 %v1511
        %v1523 = vunpack.c.l.b16 %v1512
        %v1524 = vunpack.c.h.b16 %v1512
        %v1525 = vunpack.c.l.b16 %v1513
        %v1526 = vunpack.c.h.b16 %v1513
        %v1527 = vunpack.c.l.b16 %v1514
        %v1528 = vunpack.c.h.b16 %v1514
        %v1529 = vunpack.c.l.b16 %v1515
        %v1530 = vunpack.c.h.b16 %v1515
        %v1531 = vpack.c.b16 %v1523, %v1521
        %v1532 = vpack.c.b16 %v1524, %v1522
        %v1533 = vpack.c.b16 %v1527, %v1525
        %v1534 = vpack.c.b16 %v1528, %v1526
        %v1535 = vpack.c.b16 %v1529, %v1529
        %v1536 = vpack.c.b16 %v1530, %v1530
        %vm1541 = vcmask 293888
        %v1543 = vsel %vm1541, %v1510, 0
        %vm1545 = vcmask 1041408
        %v1547 = vsel %vm1545, %v1535, 0
        %v1550 = vsel %vm1545, %v1536, 0
        %1552 = vmatpush.bf16.msra.mxu0 0
        %1553 = vmatpush.bf16.msra.mxu0 0
        %1554 = vmatpush.bf16.msra.mxu0 0
        %1555 = vmatpush.bf16.msra.mxu0 0
        %1556 = vmatpush.bf16.msra.mxu0 0
        %1557 = vmatpush.bf16.msra.mxu0 %v1547
        %1558 = vmatpush.bf16.msra.mxu0 %v1533
        %1559 = vmatpush.bf16.msra.mxu0 %v1531
        %1560 = vmatmul.bf16.gmra.mxu0 %v1543
        %v1561 = vpop.f32.mrf.mxu0
        %v1562 = vadd.f32 0.0, %v1561
        %v1563 = vpop.f32.mrf.mxu0
        %v1564 = vadd.f32 0.0, %v1563
        %1565 = vdwg.mxu0
        %1566 = vmatpush.bf16.msra.mxu0 0
        %1567 = vmatpush.bf16.msra.mxu0 0
        %1568 = vmatpush.bf16.msra.mxu0 0
        %1569 = vmatpush.bf16.msra.mxu0 0
        %1570 = vmatpush.bf16.msra.mxu0 0
        %1571 = vmatpush.bf16.msra.mxu0 %v1550
        %1572 = vmatpush.bf16.msra.mxu0 %v1534
        %1573 = vmatpush.bf16.msra.mxu0 %v1532
        %1574 = vmatmul.bf16.gmra.mxu0 %v1543
        %v1575 = vpop.f32.mrf.mxu0
        %v1576 = vadd.f32 0.0, %v1575
        %v1577 = vpop.f32.mrf.mxu0
        %v1578 = vadd.f32 0.0, %v1577
        %1579 = vdwg.mxu0
        %v1580 = vpack.c.bf16 %v1576, %v1562
        %v1581 = vpack.c.bf16 %v1578, %v1564
        %1582 = vst [vmem:[%s541 + $0x30] sm:$0xff] %v1580
        %1583 = vst [vmem:[%s541 + $0x38] sm:$0xff] %v1581
        %s1584 = sand.u32 %s401, 1
        %s1585 = scalar_lea.sflag [#allocation3], %s1584
        %s1586 = sand.u32 %s401, 1
        %s1587 = smul.addr %s1586, 64
        %s1588 = scalar_lea.vmem [#allocation2], %s1587
        // Predicated region
        $region89: #{tpu_custom_call.1} parent=87 // pred_check
          %p1589 = pneg %p411
        $region90: #{tpu_custom_call.1} parent=87 // pred_check_branch
          %1591 = sbr.rel (%p1589) target = $region92
        $region91: #{tpu_custom_call.1} parent=87 // pred_region
          %1593 = vsyncadd %s1585, 0
          %s1594 = smul.addr %s31, 16
          %s1595 = smul.addr %s1594, 4
          %s1596 = scalar_lea.hbm %s17, %s1595
          %s1597 = sshll.u32 %s1588, 4
          %s1598 = int_to_ptr.vmem [resolvable:$true] %s1597
          %s1599 = sshll.u32 %s1596, 4
          %s1600 = int_to_ptr.hbm [resolvable:$true] %s1599
          %1605 = dma.vmem_to_hbm [thread:$0]  %s1598, 1024, %s1600, %s1585, 128, 128, 8
        $region92: #{tpu_custom_call.1} parent=87 // pred_fallthru
          _
      $region88: #{tpu_custom_call.1} parent=5 // pred_fallthru
        _
      %p1606 = scmp.le.s32.totalorder 2, %s26
      // Predicated region
      $region93: #{tpu_custom_call.1} parent=5 // pred_check
        %p1607 = pneg %p1606
      $region94: #{tpu_custom_call.1} parent=5 // pred_check_branch
        %1609 = sbr.rel (%p1607) target = $region96
      $region95: #{tpu_custom_call.1} parent=5 // pred_region
        %s1610 = ssub.s32 %s26, 2
        // Predicated region
        $region97: #{tpu_custom_call.1} parent=95 // pred_check
          %p1611 = pneg %p417
        $region98: #{tpu_custom_call.1} parent=95 // pred_check_branch
          %1613 = sbr.rel (%p1611) target = $region100
        $region99: #{tpu_custom_call.1} parent=95 // pred_region
          %s1614 = sand.u32 %s402, 1
          %s1615 = scalar_lea.sflag [#allocation3], %s1614
          %s1616 = sand.u32 %s402, 1
          %s1617 = smul.addr %s1616, 64
          %s1618 = scalar_lea.vmem [#allocation2], %s1617
          %1620 = dma.done %s1615, 1024
        $region100: #{tpu_custom_call.1} parent=95 // pred_fallthru
          _
      $region96: #{tpu_custom_call.1} parent=5 // pred_fallthru
        _
    $region6: #{tpu_custom_call.1} parent=1 // loop_footer
      %s30 = sadd.s32 1, %s26
    $region7: #{tpu_custom_call.1} parent=1 // loop_footer_branch
      %25 = sbr.rel target = $region3
    $region8: #{tpu_custom_call.1} parent=1 // loop_exit
      _
    %1621 = vsyncpa [#allocation3], 1
    %s1622 = scalar_lea.sflag [#allocation3], 1
    %1623 = vsyncpa %s1622, 1

</llo_original>
